<compile_context>
chip_gen: v6e
topology: v6e:2x2x1
jax: 0.10.0
libtpu: 0.0.40
codegen_flags: <defaults>
</compile_context>

<pallas_src>
import jax
import jax.numpy as jnp
from jax.experimental import pallas as pl
from jax.experimental.pallas import tpu as pltpu

NEG_SLOPE = 0.01   # nn.LeakyReLU default
LANES = 128        # embedding_dimension
TK = 256           # K-chunk streamed for the des/tweet projections


def _leaky(x):
    return jnp.where(x > 0, x, NEG_SLOPE * x)


def _round_up(n, m):
    return ((n + m - 1) // m) * m


# ------------------------------ fused kernel -------------------------------

def dgcn_fused_kernel(des_ref, tw_ref, wd_ref, wt_ref,
                      ncp_ref, wnc_ref, w_ref, b_ref, a_ref,
                      o_ref, acc_ref):
    f32 = jnp.float32
    bf16 = jnp.bfloat16

    def mm(lhs, rhs):
        # bf16 operands, f32 accumulation on the MXU.
        return jnp.dot(lhs.astype(bf16), rhs.astype(bf16),
                       preferred_element_type=f32)

    k = pl.program_id(0)

    @pl.when(k == 0)
    def _():
        acc_ref[...] = jnp.zeros_like(acc_ref)

    # --- des/tweet projections: stream one K-chunk per grid step ------------
    # Lane-padded weights => lanes [0,32) hold des, [32,64) hold tweet.
    acc_ref[...] += (mm(des_ref[...], wd_ref[...])
                     + mm(tw_ref[...], wt_ref[...]))

    @pl.when(k == pl.num_programs(0) - 1)
    def _():
        b = b_ref[...]                                     # [8, 128] biases

        def wslab(i):                                      # [128,128] bf16 slab
            return w_ref[i * LANES:(i + 1) * LANES, :]

        # cat(d, t, n, c): the padded-lane projections sum to the concat.
        dt = _leaky(acc_ref[...] + b[0:1])                 # [d | t | 0 | 0]
        nc = _leaky(mm(ncp_ref[...], wnc_ref[...]) + b[1:2])  # [0 | 0 | n | c]
        x = dt + nc

        # linear_relu_input: single K=128 matmul on the concatenation.
        x = _leaky(mm(x, wslab(0)) + b[2:3])

        a = a_ref[...]                                     # normalized A (bf16)
        # gcn1: A_hat @ (x @ Wg1) + bg1  (no activation in the reference)
        x = mm(a, mm(x, wslab(1))) + b[3:4]
        # TODO(synk): F.dropout(p=0.3) between gcn1/gcn2 is identity in eval
        # mode; stochastic training-mode dropout intentionally omitted.
        # gcn2
        x = mm(a, mm(x, wslab(2))) + b[4:5]
        # output head: LeakyReLU(x @ Wo1 + bo1) @ Wo2_pad + bo2_pad
        h = _leaky(mm(x, wslab(3)) + b[5:6])
        # wo2/bo2 zero-padded to 128 lanes -> lane-dense store; wrapper slices.
        o_ref[...] = mm(h, wslab(4)) + b[6:7]


# ----------------------------- glue (plain JAX) -----------------------------

def build_gcn_adjacency(edge_index, num_nodes):
    """Dense GCN-normalized adjacency D^{-1/2}(A + I)D^{-1/2}.

    Built with one-hot matmuls (no TPU scatter-add).  Row = target node, so
    A_hat @ x reproduces GCNConv's source->target aggregation.  For a static
    graph call this ONCE, outside the per-step jit.
    """
    src, dst = edge_index[0], edge_index[1]
    w = (src != dst).astype(jnp.float32)            # drop existing self-loops
    oh_dst = jax.nn.one_hot(dst, num_nodes, dtype=jnp.float32)   # [E, N]
    oh_src = jax.nn.one_hot(src, num_nodes, dtype=jnp.float32)   # [E, N]
    a = jnp.dot(oh_dst.T, w[:, None] * oh_src)      # A[dst, src] += w
    a = a + jnp.eye(num_nodes, dtype=jnp.float32)   # unit self-loops
    dinv = jax.lax.rsqrt(a.sum(axis=1))             # deg >= 1
    return a * dinv[:, None] * dinv[None, :]


def init_params(key, des_size=768, tweet_size=768, num_prop_size=6,
                cat_prop_size=11, emb=128):
    """nn.Linear-style init (uniform +-1/sqrt(fan_in)); weights are [F_in, F_out]."""
    def lin(k, fin, fout):
        kw, kb = jax.random.split(k)
        bound = 1.0 / jnp.sqrt(jnp.float32(fin))
        w = jax.random.uniform(kw, (fin, fout), jnp.float32, -bound, bound)
        b = jax.random.uniform(kb, (1, fout), jnp.float32, -bound, bound)
        return w, b

    ks = jax.random.split(key, 9)
    q = emb // 4
    p = {}
    p["wd"], p["bd"] = lin(ks[0], des_size, q)
    p["wt"], p["bt"] = lin(ks[1], tweet_size, q)
    p["wn"], p["bn"] = lin(ks[2], num_prop_size, q)
    p["wc"], p["bc"] = lin(ks[3], cat_prop_size, q)
    p["w_in"], p["bin"] = lin(ks[4], emb, emb)
    p["wg1"], p["bg1"] = lin(ks[5], emb, emb)
    p["wg2"], p["bg2"] = lin(ks[6], emb, emb)
    p["wo1"], p["bo1"] = lin(ks[7], emb, emb)
    p["wo2"], p["bo2"] = lin(ks[8], emb, 2)
    return p


def prepare_params(p):
    """One-time packing: lane-offset padding, weight/bias stacking, bf16 cast."""
    f32 = jnp.float32
    bf16 = jnp.bfloat16
    emb = p["w_in"].shape[0]
    q = emb // 4

    def place_cols(w, off):
        out = jnp.zeros((w.shape[0], LANES), f32)
        return out.at[:, off:off + w.shape[1]].set(w)

    wd_pad = place_cols(p["wd"], 0 * q)              # des   -> lanes [0, 32)
    wt_pad = place_cols(p["wt"], 1 * q)              # tweet -> lanes [32, 64)

    n_num = p["wn"].shape[0]
    n_cat = p["wc"].shape[0]
    wnc = jnp.zeros((LANES, LANES), f32)
    wnc = wnc.at[:n_num, 2 * q:3 * q].set(p["wn"])                   # -> [64, 96)
    wnc = wnc.at[n_num:n_num + n_cat, 3 * q:4 * q].set(p["wc"])      # -> [96,128)

    wo2_pad = place_cols(p["wo2"], 0)                # 2-wide head padded to 128
    w_stack = jnp.concatenate(
        [p["w_in"], p["wg1"], p["wg2"], p["wo1"], wo2_pad], axis=0)  # [640,128]

    zq2 = jnp.zeros((1, 2 * q), f32)
    b_dt = jnp.concatenate([p["bd"], p["bt"], zq2], axis=1)
    b_nc = jnp.concatenate([zq2, p["bn"], p["bc"]], axis=1)
    bo2_pad = place_cols(p["bo2"], 0)
    b_stack = jnp.concatenate(
        [b_dt, b_nc, p["bin"], p["bg1"], p["bg2"], p["bo1"], bo2_pad,
         jnp.zeros((1, LANES), f32)], axis=0)        # [8, 128]

    return {
        "wd": wd_pad.astype(bf16),
        "wt": wt_pad.astype(bf16),
        "wnc": wnc.astype(bf16),
        "w_stack": w_stack.astype(bf16),
        "b_stack": b_stack,
    }


def dgcn_apply(kp, des, tweet, num_prop, cat_prop, a_hat, n_classes=2):
    """Fused DGCN forward. `a_hat` is the pre-built GCN-normalized adjacency."""
    f32 = jnp.float32
    n = des.shape[0]
    n_pad = _round_up(n, 8)
    k_dim = des.shape[1]
    num_k = k_dim // TK
    assert num_k * TK == k_dim, "des/tweet feature dim must be a multiple of TK"

    def pad_rows(x):
        return x if x.shape[0] == n_pad else jnp.pad(
            x, ((0, n_pad - x.shape[0]), (0, 0)))

    des_p = pad_rows(des.astype(f32))
    tw_p = pad_rows(tweet.astype(f32))
    ncp = jnp.concatenate([num_prop, cat_prop], axis=1).astype(f32)
    ncp = jnp.pad(ncp, ((0, n_pad - n), (0, LANES - ncp.shape[1])))
    a_p = a_hat.astype(jnp.bfloat16)
    if a_p.shape[0] != n_pad:
        a_p = jnp.pad(a_p, ((0, n_pad - n), (0, n_pad - n)))

    args = (des_p, tw_p, kp["wd"], kp["wt"], ncp, kp["wnc"],
            kp["w_stack"], kp["b_stack"], a_p)

    flops = 2 * n_pad * (2 * k_dim * LANES          # des/tweet projections
                         + 6 * LANES * LANES        # nc, w_in, wg1, wg2, wo1, wo2
                         + 2 * n_pad * LANES)       # two A_hat @ x
    bytes_accessed = sum(int(a.size) * a.dtype.itemsize for a in args) \
        + n_pad * LANES * 4

    grid_spec = pltpu.PrefetchScalarGridSpec(
        num_scalar_prefetch=0,
        grid=(num_k,),
        in_specs=[
            pl.BlockSpec((n_pad, TK), lambda k: (0, k)),       # des K-chunk
            pl.BlockSpec((n_pad, TK), lambda k: (0, k)),       # tweet K-chunk
            pl.BlockSpec((TK, LANES), lambda k: (k, 0)),       # wd K-slab
            pl.BlockSpec((TK, LANES), lambda k: (k, 0)),       # wt K-slab
            pl.BlockSpec((n_pad, LANES), lambda k: (0, 0)),    # merged num/cat
            pl.BlockSpec((LANES, LANES), lambda k: (0, 0)),    # wnc
            pl.BlockSpec((5 * LANES, LANES), lambda k: (0, 0)),  # stacked weights
            pl.BlockSpec((8, LANES), lambda k: (0, 0)),        # stacked biases
            pl.BlockSpec((n_pad, n_pad), lambda k: (0, 0)),    # A_hat
        ],
        out_specs=pl.BlockSpec((n_pad, LANES), lambda k: (0, 0)),
        scratch_shapes=[pltpu.VMEM((n_pad, LANES), f32)],
    )

    out_padded = pl.pallas_call(
        dgcn_fused_kernel,
        out_shape=jax.ShapeDtypeStruct((n_pad, LANES), f32),
        grid_spec=grid_spec,
        compiler_params=pltpu.CompilerParams(
            dimension_semantics=("arbitrary",)),
        cost_estimate=pl.CostEstimate(
            flops=int(flops), transcendentals=0,
            bytes_accessed=int(bytes_accessed)),
    )(*args)
    # TODO(synk): for large N, tile A_hat as a (TM, N) row slab on an extra
    # "parallel" grid axis (engages v7x's second TensorCore, keeps VMEM under
    # its 64 MiB limit) or switch to a CSR + scalar-prefetch path.
    return out_padded[:n, :n_classes]


# ----------------------------------- main -----------------------------------

if __name__ == "__main__":
    key = jax.random.PRNGKey(0)
    k_par, k_des, k_tw, k_np, k_cp, k_src, k_dst, k_rel = jax.random.split(key, 8)

    N = 128          # number of graph nodes
    E = 256          # number of edges
    DES, TW, NUMP, CATP = 768, 768, 6, 11
    params = init_params(k_par, des_size=DES, tweet_size=TW,
                         num_prop_size=NUMP, cat_prop_size=CATP, emb=128)

    des = jax.random.normal(k_des, (N, DES), jnp.float32)
    tweet = jax.random.normal(k_tw, (N, TW), jnp.float32)
    num_prop = jax.random.normal(k_np, (N, NUMP), jnp.float32)
    cat_prop = jax.random.normal(k_cp, (N, CATP), jnp.float32)
    edge_index = jnp.stack([
        jax.random.randint(k_src, (E,), 0, N, jnp.int32),
        jax.random.randint(k_dst, (E,), 0, N, jnp.int32),
    ], axis=0)
    edge_type = jax.random.randint(k_rel, (E,), 0, 2, jnp.int32)  # unused by
    # the reference forward (GCNConv ignores edge_type).

    # Static-graph / constant-parameter work done ONCE, outside the per-step jit:
    a_hat = build_gcn_adjacency(edge_index, N).astype(jnp.bfloat16)
    kparams = prepare_params(params)

    fwd = jax.jit(dgcn_apply, static_argnames=("n_classes",))
    out = fwd(kparams, des, tweet, num_prop, cat_prop, a_hat, n_classes=2)
    jax.block_until_ready(out)
    assert out.shape == (N, 2) and out.dtype == jnp.float32
    print("KERNEL_OK")
</pallas_src>

<mosaic_0001>
module attributes {stable_mosaic.version = 11 : i64} {
  func.func @dgcn_fused_kernel(%arg0: i32, %arg1: memref<128x256xf32, #tpu.memory_space<vmem>>, %arg2: memref<128x256xf32, #tpu.memory_space<vmem>>, %arg3: memref<256x128xbf16, #tpu.memory_space<vmem>>, %arg4: memref<256x128xbf16, #tpu.memory_space<vmem>>, %arg5: memref<128x128xf32, #tpu.memory_space<vmem>>, %arg6: memref<128x128xbf16, #tpu.memory_space<vmem>>, %arg7: memref<640x128xbf16, #tpu.memory_space<vmem>>, %arg8: memref<8x128xf32, #tpu.memory_space<vmem>>, %arg9: memref<128x128xbf16, #tpu.memory_space<vmem>>, %arg10: memref<128x128xf32, #tpu.memory_space<vmem>>, %arg11: memref<128x128xf32, #tpu.memory_space<vmem>>) attributes {dimension_semantics = [#tpu.dimension_semantics<arbitrary>], iteration_bounds = array<i64: 3>, scalar_prefetch = 0 : i64, scratch_operands = 1 : i64, tpu.core_type = #tpu.core_type<tc>, window_params = [{transform_indices = @transform_0, window_bounds = array<i64: 128, 256>}, {transform_indices = @transform_1, window_bounds = array<i64: 128, 256>}, {transform_indices = @transform_2, window_bounds = array<i64: 256, 128>}, {transform_indices = @transform_3, window_bounds = array<i64: 256, 128>}, {pipeline_mode = #tpu.pipeline_mode<synchronous>, transform_indices = @transform_4, window_bounds = array<i64: 128, 128>}, {pipeline_mode = #tpu.pipeline_mode<synchronous>, transform_indices = @transform_5, window_bounds = array<i64: 128, 128>}, {pipeline_mode = #tpu.pipeline_mode<synchronous>, transform_indices = @transform_6, window_bounds = array<i64: 640, 128>}, {pipeline_mode = #tpu.pipeline_mode<synchronous>, transform_indices = @transform_7, window_bounds = array<i64: 8, 128>}, {pipeline_mode = #tpu.pipeline_mode<synchronous>, transform_indices = @transform_8, window_bounds = array<i64: 128, 128>}, {pipeline_mode = #tpu.pipeline_mode<synchronous>, transform_indices = @transform_9, window_bounds = array<i64: 128, 128>}]} {
    %c0_i32 = arith.constant 0 : i32
    %0 = arith.cmpi eq, %arg0, %c0_i32 : i32
    %1 = arith.extui %0 : i1 to i32
    %c0_i32_0 = arith.constant 0 : i32
    %2 = arith.cmpi ne, %1, %c0_i32_0 : i32
    scf.if %2 {
      %cst_14 = arith.constant 0.000000e+00 : f32
      %18 = vector.broadcast %cst_14 : f32 to vector<128x128xf32>
      %c0_15 = arith.constant 0 : index
      %c0_16 = arith.constant 0 : index
      %19 = vector.load %arg11[%c0_15, %c0_16] : memref<128x128xf32, #tpu.memory_space<vmem>>, vector<128x128xf32>
      tpu.vector_store %arg11[%c0_15, %c0_16], %18 {strides = array<i32>} : memref<128x128xf32, #tpu.memory_space<vmem>>, vector<128x128xf32>,
    } else {
    }
    %c0 = arith.constant 0 : index
    %c0_1 = arith.constant 0 : index
    %3 = vector.load %arg11[%c0, %c0_1] : memref<128x128xf32, #tpu.memory_space<vmem>>, vector<128x128xf32>
    %c0_2 = arith.constant 0 : index
    %c0_3 = arith.constant 0 : index
    %4 = vector.load %arg1[%c0_2, %c0_3] : memref<128x256xf32, #tpu.memory_space<vmem>>, vector<128x256xf32>
    %c0_4 = arith.constant 0 : index
    %c0_5 = arith.constant 0 : index
    %5 = vector.load %arg3[%c0_4, %c0_5] : memref<256x128xbf16, #tpu.memory_space<vmem>>, vector<256x128xbf16>
    %6 = arith.truncf %4 : vector<128x256xf32> to vector<128x256xbf16>
    %cst = arith.constant dense<0.000000e+00> : vector<128x128xf32>
    %7 = tpu.matmul %6, %5, %cst {dimension_numbers = #tpu.dot_dimension_numbers<[1], [0], [0], [1], [0, 0, 1, 1], [], []>} : vector<128x256xbf16>, vector<256x128xbf16>, vector<128x128xf32> -> vector<128x128xf32>
    %c0_6 = arith.constant 0 : index
    %c0_7 = arith.constant 0 : index
    %8 = vector.load %arg2[%c0_6, %c0_7] : memref<128x256xf32, #tpu.memory_space<vmem>>, vector<128x256xf32>
    %c0_8 = arith.constant 0 : index
    %c0_9 = arith.constant 0 : index
    %9 = vector.load %arg4[%c0_8, %c0_9] : memref<256x128xbf16, #tpu.memory_space<vmem>>, vector<256x128xbf16>
    %10 = arith.truncf %8 : vector<128x256xf32> to vector<128x256xbf16>
    %cst_10 = arith.constant dense<0.000000e+00> : vector<128x128xf32>
    %11 = tpu.matmul %10, %9, %cst_10 {dimension_numbers = #tpu.dot_dimension_numbers<[1], [0], [0], [1], [0, 0, 1, 1], [], []>} : vector<128x256xbf16>, vector<256x128xbf16>, vector<128x128xf32> -> vector<128x128xf32>
    %12 = arith.addf %7, %11 : vector<128x128xf32>
    %13 = arith.addf %3, %12 : vector<128x128xf32>
    %c0_11 = arith.constant 0 : index
    %c0_12 = arith.constant 0 : index
    %14 = vector.load %arg11[%c0_11, %c0_12] : memref<128x128xf32, #tpu.memory_space<vmem>>, vector<128x128xf32>
    tpu.vector_store %arg11[%c0_11, %c0_12], %13 {strides = array<i32>} : memref<128x128xf32, #tpu.memory_space<vmem>>, vector<128x128xf32>,
    %c2_i32 = arith.constant 2 : i32
    %15 = arith.cmpi eq, %arg0, %c2_i32 : i32
    %16 = arith.extui %15 : i1 to i32
    %c0_i32_13 = arith.constant 0 : i32
    %17 = arith.cmpi ne, %16, %c0_i32_13 : i32
    scf.if %17 {
      %c0_14 = arith.constant 0 : index
      %c0_15 = arith.constant 0 : index
      %18 = vector.load %arg8[%c0_14, %c0_15] : memref<8x128xf32, #tpu.memory_space<vmem>>, vector<8x128xf32>
      %c0_16 = arith.constant 0 : index
      %c0_17 = arith.constant 0 : index
      %19 = vector.load %arg11[%c0_16, %c0_17] : memref<128x128xf32, #tpu.memory_space<vmem>>, vector<128x128xf32>
      %20 = vector.extract_strided_slice %18 {offsets = [0, 0], sizes = [1, 128], strides = [1, 1]} : vector<8x128xf32> to vector<1x128xf32>
      %21 = vector.broadcast %20 : vector<1x128xf32> to vector<128x128xf32>
      %22 = arith.addf %19, %21 : vector<128x128xf32>
      %cst_18 = arith.constant 0.000000e+00 : f32
      %23 = vector.broadcast %cst_18 : f32 to vector<128x128xf32>
      %24 = arith.cmpf ogt, %22, %23 : vector<128x128xf32>
      %cst_19 = arith.constant 0.00999999977 : f32
      %25 = vector.broadcast %cst_19 : f32 to vector<128x128xf32>
      %26 = arith.mulf %25, %22 : vector<128x128xf32>
      %27 = arith.select %24, %22, %26 : vector<128x128xi1>, vector<128x128xf32>
      %c0_20 = arith.constant 0 : index
      %c0_21 = arith.constant 0 : index
      %28 = vector.load %arg5[%c0_20, %c0_21] : memref<128x128xf32, #tpu.memory_space<vmem>>, vector<128x128xf32>
      %c0_22 = arith.constant 0 : index
      %c0_23 = arith.constant 0 : index
      %29 = vector.load %arg6[%c0_22, %c0_23] : memref<128x128xbf16, #tpu.memory_space<vmem>>, vector<128x128xbf16>
      %30 = arith.truncf %28 : vector<128x128xf32> to vector<128x128xbf16>
      %cst_24 = arith.constant dense<0.000000e+00> : vector<128x128xf32>
      %31 = tpu.matmul %30, %29, %cst_24 {dimension_numbers = #tpu.dot_dimension_numbers<[1], [0], [0], [1], [0, 0, 1, 1], [], []>} : vector<128x128xbf16>, vector<128x128xbf16>, vector<128x128xf32> -> vector<128x128xf32>
      %32 = vector.extract_strided_slice %18 {offsets = [1, 0], sizes = [1, 128], strides = [1, 1]} : vector<8x128xf32> to vector<1x128xf32>
      %33 = vector.broadcast %32 : vector<1x128xf32> to vector<128x128xf32>
      %34 = arith.addf %31, %33 : vector<128x128xf32>
      %cst_25 = arith.constant 0.000000e+00 : f32
      %35 = vector.broadcast %cst_25 : f32 to vector<128x128xf32>
      %36 = arith.cmpf ogt, %34, %35 : vector<128x128xf32>
      %cst_26 = arith.constant 0.00999999977 : f32
      %37 = vector.broadcast %cst_26 : f32 to vector<128x128xf32>
      %38 = arith.mulf %37, %34 : vector<128x128xf32>
      %39 = arith.select %36, %34, %38 : vector<128x128xi1>, vector<128x128xf32>
      %40 = arith.addf %27, %39 : vector<128x128xf32>
      %c0_27 = arith.constant 0 : index
      %c0_28 = arith.constant 0 : index
      %41 = vector.load %arg7[%c0_27, %c0_28] : memref<640x128xbf16, #tpu.memory_space<vmem>>, vector<128x128xbf16>
      %42 = arith.truncf %40 : vector<128x128xf32> to vector<128x128xbf16>
      %cst_29 = arith.constant dense<0.000000e+00> : vector<128x128xf32>
      %43 = tpu.matmul %42, %41, %cst_29 {dimension_numbers = #tpu.dot_dimension_numbers<[1], [0], [0], [1], [0, 0, 1, 1], [], []>} : vector<128x128xbf16>, vector<128x128xbf16>, vector<128x128xf32> -> vector<128x128xf32>
      %44 = vector.extract_strided_slice %18 {offsets = [2, 0], sizes = [1, 128], strides = [1, 1]} : vector<8x128xf32> to vector<1x128xf32>
      %45 = vector.broadcast %44 : vector<1x128xf32> to vector<128x128xf32>
      %46 = arith.addf %43, %45 : vector<128x128xf32>
      %cst_30 = arith.constant 0.000000e+00 : f32
      %47 = vector.broadcast %cst_30 : f32 to vector<128x128xf32>
      %48 = arith.cmpf ogt, %46, %47 : vector<128x128xf32>
      %cst_31 = arith.constant 0.00999999977 : f32
      %49 = vector.broadcast %cst_31 : f32 to vector<128x128xf32>
      %50 = arith.mulf %49, %46 : vector<128x128xf32>
      %51 = arith.select %48, %46, %50 : vector<128x128xi1>, vector<128x128xf32>
      %c0_32 = arith.constant 0 : index
      %c0_33 = arith.constant 0 : index
      %52 = vector.load %arg9[%c0_32, %c0_33] : memref<128x128xbf16, #tpu.memory_space<vmem>>, vector<128x128xbf16>
      %c128 = arith.constant 128 : index
      %c0_34 = arith.constant 0 : index
      %53 = vector.load %arg7[%c128, %c0_34] : memref<640x128xbf16, #tpu.memory_space<vmem>>, vector<128x128xbf16>
      %54 = arith.truncf %51 : vector<128x128xf32> to vector<128x128xbf16>
      %cst_35 = arith.constant dense<0.000000e+00> : vector<128x128xf32>
      %55 = tpu.matmul %54, %53, %cst_35 {dimension_numbers = #tpu.dot_dimension_numbers<[1], [0], [0], [1], [0, 0, 1, 1], [], []>} : vector<128x128xbf16>, vector<128x128xbf16>, vector<128x128xf32> -> vector<128x128xf32>
      %56 = arith.truncf %55 : vector<128x128xf32> to vector<128x128xbf16>
      %cst_36 = arith.constant dense<0.000000e+00> : vector<128x128xf32>
      %57 = tpu.matmul %52, %56, %cst_36 {dimension_numbers = #tpu.dot_dimension_numbers<[1], [0], [0], [1], [0, 0, 1, 1], [], []>} : vector<128x128xbf16>, vector<128x128xbf16>, vector<128x128xf32> -> vector<128x128xf32>
      %58 = vector.extract_strided_slice %18 {offsets = [3, 0], sizes = [1, 128], strides = [1, 1]} : vector<8x128xf32> to vector<1x128xf32>
      %59 = vector.broadcast %58 : vector<1x128xf32> to vector<128x128xf32>
      %60 = arith.addf %57, %59 : vector<128x128xf32>
      %c256 = arith.constant 256 : index
      %c0_37 = arith.constant 0 : index
      %61 = vector.load %arg7[%c256, %c0_37] : memref<640x128xbf16, #tpu.memory_space<vmem>>, vector<128x128xbf16>
      %62 = arith.truncf %60 : vector<128x128xf32> to vector<128x128xbf16>
      %cst_38 = arith.constant dense<0.000000e+00> : vector<128x128xf32>
      %63 = tpu.matmul %62, %61, %cst_38 {dimension_numbers = #tpu.dot_dimension_numbers<[1], [0], [0], [1], [0, 0, 1, 1], [], []>} : vector<128x128xbf16>, vector<128x128xbf16>, vector<128x128xf32> -> vector<128x128xf32>
      %64 = arith.truncf %63 : vector<128x128xf32> to vector<128x128xbf16>
      %cst_39 = arith.constant dense<0.000000e+00> : vector<128x128xf32>
      %65 = tpu.matmul %52, %64, %cst_39 {dimension_numbers = #tpu.dot_dimension_numbers<[1], [0], [0], [1], [0, 0, 1, 1], [], []>} : vector<128x128xbf16>, vector<128x128xbf16>, vector<128x128xf32> -> vector<128x128xf32>
      %66 = vector.extract_strided_slice %18 {offsets = [4, 0], sizes = [1, 128], strides = [1, 1]} : vector<8x128xf32> to vector<1x128xf32>
      %67 = vector.broadcast %66 : vector<1x128xf32> to vector<128x128xf32>
      %68 = arith.addf %65, %67 : vector<128x128xf32>
      %c384 = arith.constant 384 : index
      %c0_40 = arith.constant 0 : index
      %69 = vector.load %arg7[%c384, %c0_40] : memref<640x128xbf16, #tpu.memory_space<vmem>>, vector<128x128xbf16>
      %70 = arith.truncf %68 : vector<128x128xf32> to vector<128x128xbf16>
      %cst_41 = arith.constant dense<0.000000e+00> : vector<128x128xf32>
      %71 = tpu.matmul %70, %69, %cst_41 {dimension_numbers = #tpu.dot_dimension_numbers<[1], [0], [0], [1], [0, 0, 1, 1], [], []>} : vector<128x128xbf16>, vector<128x128xbf16>, vector<128x128xf32> -> vector<128x128xf32>
      %72 = vector.extract_strided_slice %18 {offsets = [5, 0], sizes = [1, 128], strides = [1, 1]} : vector<8x128xf32> to vector<1x128xf32>
      %73 = vector.broadcast %72 : vector<1x128xf32> to vector<128x128xf32>
      %74 = arith.addf %71, %73 : vector<128x128xf32>
      %cst_42 = arith.constant 0.000000e+00 : f32
      %75 = vector.broadcast %cst_42 : f32 to vector<128x128xf32>
      %76 = arith.cmpf ogt, %74, %75 : vector<128x128xf32>
      %cst_43 = arith.constant 0.00999999977 : f32
      %77 = vector.broadcast %cst_43 : f32 to vector<128x128xf32>
      %78 = arith.mulf %77, %74 : vector<128x128xf32>
      %79 = arith.select %76, %74, %78 : vector<128x128xi1>, vector<128x128xf32>
      %c512 = arith.constant 512 : index
      %c0_44 = arith.constant 0 : index
      %80 = vector.load %arg7[%c512, %c0_44] : memref<640x128xbf16, #tpu.memory_space<vmem>>, vector<128x128xbf16>
      %81 = arith.truncf %79 : vector<128x128xf32> to vector<128x128xbf16>
      %cst_45 = arith.constant dense<0.000000e+00> : vector<128x128xf32>
      %82 = tpu.matmul %81, %80, %cst_45 {dimension_numbers = #tpu.dot_dimension_numbers<[1], [0], [0], [1], [0, 0, 1, 1], [], []>} : vector<128x128xbf16>, vector<128x128xbf16>, vector<128x128xf32> -> vector<128x128xf32>
      %83 = vector.extract_strided_slice %18 {offsets = [6, 0], sizes = [1, 128], strides = [1, 1]} : vector<8x128xf32> to vector<1x128xf32>
      %84 = vector.broadcast %83 : vector<1x128xf32> to vector<128x128xf32>
      %85 = arith.addf %82, %84 : vector<128x128xf32>
      %c0_46 = arith.constant 0 : index
      %c0_47 = arith.constant 0 : index
      %86 = vector.load %arg10[%c0_46, %c0_47] : memref<128x128xf32, #tpu.memory_space<vmem>>, vector<128x128xf32>
      tpu.vector_store %arg10[%c0_46, %c0_47], %85 {strides = array<i32>} : memref<128x128xf32, #tpu.memory_space<vmem>>, vector<128x128xf32>,
    } else {
    }
    return
  }
  func.func @transform_0(%arg0: i32) -> (i32, i32) {
    %c0_i32 = arith.constant 0 : i32
    %c0_i32_0 = arith.constant 0 : i32
    return %c0_i32, %arg0 : i32, i32
  }
  func.func @transform_1(%arg0: i32) -> (i32, i32) {
    %c0_i32 = arith.constant 0 : i32
    %c0_i32_0 = arith.constant 0 : i32
    return %c0_i32, %arg0 : i32, i32
  }
  func.func @transform_2(%arg0: i32) -> (i32, i32) {
    %c0_i32 = arith.constant 0 : i32
    %c0_i32_0 = arith.constant 0 : i32
    return %arg0, %c0_i32 : i32, i32
  }
  func.func @transform_3(%arg0: i32) -> (i32, i32) {
    %c0_i32 = arith.constant 0 : i32
    %c0_i32_0 = arith.constant 0 : i32
    return %arg0, %c0_i32 : i32, i32
  }
  func.func @transform_4(%arg0: i32) -> (i32, i32) {
    %c0_i32 = arith.constant 0 : i32
    %c0_i32_0 = arith.constant 0 : i32
    %c0_i32_1 = arith.constant 0 : i32
    return %c0_i32, %c0_i32_0 : i32, i32
  }
  func.func @transform_5(%arg0: i32) -> (i32, i32) {
    %c0_i32 = arith.constant 0 : i32
    %c0_i32_0 = arith.constant 0 : i32
    %c0_i32_1 = arith.constant 0 : i32
    return %c0_i32, %c0_i32_0 : i32, i32
  }
  func.func @transform_6(%arg0: i32) -> (i32, i32) {
    %c0_i32 = arith.constant 0 : i32
    %c0_i32_0 = arith.constant 0 : i32
    %c0_i32_1 = arith.constant 0 : i32
    return %c0_i32, %c0_i32_0 : i32, i32
  }
  func.func @transform_7(%arg0: i32) -> (i32, i32) {
    %c0_i32 = arith.constant 0 : i32
    %c0_i32_0 = arith.constant 0 : i32
    %c0_i32_1 = arith.constant 0 : i32
    return %c0_i32, %c0_i32_0 : i32, i32
  }
  func.func @transform_8(%arg0: i32) -> (i32, i32) {
    %c0_i32 = arith.constant 0 : i32
    %c0_i32_0 = arith.constant 0 : i32
    %c0_i32_1 = arith.constant 0 : i32
    return %c0_i32, %c0_i32_0 : i32, i32
  }
  func.func @transform_9(%arg0: i32) -> (i32, i32) {
    %c0_i32 = arith.constant 0 : i32
    %c0_i32_0 = arith.constant 0 : i32
    %c0_i32_1 = arith.constant 0 : i32
    return %c0_i32, %c0_i32_0 : i32, i32
  }
}

</mosaic_0001>

<llo_original>
// kernel: dgcn_apply.1
$region0: #{dgcn_apply.1}
  #allocation0 [shape = 'u32[]', space=smem, size = 0x4, offset = 0x4, fixed_abs, tag = 'smem constant byte address 0x4 - core index']
  #allocation1 [shape = 'u32[144,128]{1,0:T(1,128)}', space=vmem, size = 0x12000, scoped, tag = 'internal scratch']
  #allocation2 [shape = 'f32[128,128]{1,0:T(8,128)}', space=vmem, size = 0x10000, scoped, tag = 'scratch operand']
  %s0 = inlined_call_operand.hbm [shape: f32[128,768], index: 0, kind: input, shape index: {}]
  %s1 = inlined_call_operand.hbm [shape: f32[128,768], index: 1, kind: input, shape index: {}]
  %s2 = inlined_call_operand.vmem [shape: bf16[768,128], index: 2, kind: input, shape index: {}]
  %s3 = inlined_call_operand.hbm [shape: bf16[768,128], index: 3, kind: input, shape index: {}]
  %s4 = inlined_call_operand.vmem [shape: f32[128,128], index: 4, kind: input, shape index: {}]
  %s5 = inlined_call_operand.vmem [shape: bf16[128,128], index: 5, kind: input, shape index: {}]
  %s6 = inlined_call_operand.hbm [shape: bf16[640,128], index: 6, kind: input, shape index: {}]
  %s7 = inlined_call_operand.vmem [shape: f32[8,128], index: 7, kind: input, shape index: {}]
  %s8 = inlined_call_operand.hbm [shape: bf16[128,128], index: 8, kind: input, shape index: {}]
  %s9 = inlined_call_operand.vmem [shape: f32[128,128], index: 9, kind: output, shape index: {}]
  %s10 = sld [smem:[#allocation0]]
  $region97: #{dgcn_apply.1} parent=0
    _
  %s12 = ssub.s32 1, %s10
  %s13 = scalar_select 0, %s12, %s10
  $region1: #{dgcn_apply.1} parent=0
    #allocation3 [shape = 'u8[262144]{0}', space=vmem, size = 0x40000, scoped, tag = 'input window, operand 0']
    #allocation4 [shape = 's32[2]{0}', space=sflag, size = 0x8, scoped, tag = 'scoped memory for dgcn_apply.1']
    #allocation5 [shape = 'u8[262144]{0}', space=vmem, size = 0x40000, scoped, tag = 'input window, operand 1']
    #allocation6 [shape = 's32[2]{0}', space=sflag, size = 0x8, scoped, tag = 'scoped memory for dgcn_apply.1']
    #allocation7 [shape = 'u8[131072]{0}', space=vmem, size = 0x20000, scoped, tag = 'input window, operand 3']
    #allocation8 [shape = 'u8[163840]{0}', space=vmem, size = 0x28000, scoped, tag = 'input window, operand 6, single buffered']
    #allocation9 [shape = 's32[1]{0}', space=sflag, size = 0x4, scoped, tag = 'scoped memory for dgcn_apply.1']
    #allocation10 [shape = 'u8[32768]{0}', space=vmem, size = 0x8000, scoped, tag = 'input window, operand 8, single buffered']
    %14 = vsyncpa [#allocation4], 0
    %s15 = scalar_lea.sflag [#allocation4], 1
    %16 = vsyncpa %s15, 0
    %17 = vsyncpa [#allocation6], 0
    %s18 = scalar_lea.sflag [#allocation6], 1
    %19 = vsyncpa %s18, 0
    %20 = vsyncpa [#allocation9], 0
    loop: start=0, step=1, limit=5
    $region2: #{dgcn_apply.1} parent=1 // loop_pre_header
      _
    $region3: #{dgcn_apply.1} parent=1 // loop_header
      %s22 = sphi 0, %s26
      %p23 = scmp.ge.s32.totalorder %s22, 5
      %s32 = sphi 0, %s34
      %s35 = sphi 0, %s32
      %s36 = sphi 0, %s35
      %s52 = sphi 0, %s36
      %s58 = sphi 0, %s60
      %s61 = sphi 0, %s58
      %s62 = sphi 0, %s61
      %s78 = sphi 0, %s62
      %s84 = sphi 0, %s86
      %s87 = sphi 0, %s84
      %s88 = sphi 0, %s87
      %s104 = sphi 0, %s88
      %s110 = sphi 0, %s112
      %s113 = sphi 0, %s110
      %s114 = sphi 0, %s113
      %s130 = sphi 0, %s114
      %s134 = sphi 0, %s134
      %s136 = sphi 0, %s134
      %s137 = sphi 0, %s136
      %s151 = sphi 0, %s137
      %s155 = sphi 0, %s155
      %s157 = sphi 0, %s155
      %s158 = sphi 0, %s157
      %s172 = sphi 0, %s158
      %s176 = sphi 0, %s176
      %s178 = sphi 0, %s176
      %s179 = sphi 0, %s178
      %s193 = sphi 0, %s179
      %s197 = sphi 0, %s197
      %s199 = sphi 0, %s197
      %s200 = sphi 0, %s199
      %s214 = sphi 0, %s200
      %s218 = sphi 0, %s218
      %s220 = sphi 0, %s218
      %s221 = sphi 0, %s220
      %s235 = sphi 0, %s221
      %s239 = sphi 0, %s239
      %s241 = sphi 0, %s239
      %s242 = sphi 0, %s241
      %s256 = sphi 0, %s242
    $region4: #{dgcn_apply.1} parent=1 // loop_header_branch
      %25 = sbr.rel (%p23) target = $region8
    $region5: #{dgcn_apply.1} parent=1 // loop_body
      %s27 = ssub.s32 %s22, 1
      %s28 = ssub.s32 %s22, 2
      %s29 = sadd.s32 %s22, 1
      %s30 = ssub.s32 %s22, %s29
      %p31 = scmp.eq.s32.totalorder %s30, 0
      %s33 = sadd.s32 %s32, 1
      %s34 = scalar_select %p31, %s32, %s33
      %p37 = pneg %p31
      %p38 = scmp.eq.s32.totalorder %s22, 2
      %p39 = por %p37, %p38
      %p40 = scmp.ne.s32.totalorder %s32, %s35
      %p41 = scmp.eq.s32.totalorder %s22, 0
      %p42 = por %p40, %p41
      %p43 = scmp.ne.s32.totalorder %s32, %s35
      %p44 = scmp.eq.s32.totalorder %s27, 2
      %p45 = por %p43, %p44
      %p46 = scmp.ne.s32.totalorder %s35, %s36
      %p47 = scmp.eq.s32.totalorder %s27, 0
      %p48 = por %p46, %p47
      %p49 = scmp.ne.s32.totalorder %s35, %s36
      %p50 = scmp.eq.s32.totalorder %s28, 2
      %p51 = por %p49, %p50
      %p53 = scmp.ne.s32.totalorder %s36, %s52
      %p54 = scmp.eq.s32.totalorder %s28, 0
      %p55 = por %p53, %p54
      %s56 = ssub.s32 %s22, %s29
      %p57 = scmp.eq.s32.totalorder %s56, 0
      %s59 = sadd.s32 %s58, 1
      %s60 = scalar_select %p57, %s58, %s59
      %p63 = pneg %p57
      %p64 = scmp.eq.s32.totalorder %s22, 2
      %p65 = por %p63, %p64
      %p66 = scmp.ne.s32.totalorder %s58, %s61
      %p67 = scmp.eq.s32.totalorder %s22, 0
      %p68 = por %p66, %p67
      %p69 = scmp.ne.s32.totalorder %s58, %s61
      %p70 = scmp.eq.s32.totalorder %s27, 2
      %p71 = por %p69, %p70
      %p72 = scmp.ne.s32.totalorder %s61, %s62
      %p73 = scmp.eq.s32.totalorder %s27, 0
      %p74 = por %p72, %p73
      %p75 = scmp.ne.s32.totalorder %s61, %s62
      %p76 = scmp.eq.s32.totalorder %s28, 2
      %p77 = por %p75, %p76
      %p79 = scmp.ne.s32.totalorder %s62, %s78
      %p80 = scmp.eq.s32.totalorder %s28, 0
      %p81 = por %p79, %p80
      %s82 = ssub.s32 %s22, %s29
      %p83 = scmp.eq.s32.totalorder %s82, 0
      %s85 = sadd.s32 %s84, 1
      %s86 = scalar_select %p83, %s84, %s85
      %p89 = pneg %p83
      %p90 = scmp.eq.s32.totalorder %s22, 2
      %p91 = por %p89, %p90
      %p92 = scmp.ne.s32.totalorder %s84, %s87
      %p93 = scmp.eq.s32.totalorder %s22, 0
      %p94 = por %p92, %p93
      %p95 = scmp.ne.s32.totalorder %s84, %s87
      %p96 = scmp.eq.s32.totalorder %s27, 2
      %p97 = por %p95, %p96
      %p98 = scmp.ne.s32.totalorder %s87, %s88
      %p99 = scmp.eq.s32.totalorder %s27, 0
      %p100 = por %p98, %p99
      %p101 = scmp.ne.s32.totalorder %s87, %s88
      %p102 = scmp.eq.s32.totalorder %s28, 2
      %p103 = por %p101, %p102
      %p105 = scmp.ne.s32.totalorder %s88, %s104
      %p106 = scmp.eq.s32.totalorder %s28, 0
      %p107 = por %p105, %p106
      %s108 = ssub.s32 %s22, %s29
      %p109 = scmp.eq.s32.totalorder %s108, 0
      %s111 = sadd.s32 %s110, 1
      %s112 = scalar_select %p109, %s110, %s111
      %p115 = pneg %p109
      %p116 = scmp.eq.s32.totalorder %s22, 2
      %p117 = por %p115, %p116
      %p118 = scmp.ne.s32.totalorder %s110, %s113
      %p119 = scmp.eq.s32.totalorder %s22, 0
      %p120 = por %p118, %p119
      %p121 = scmp.ne.s32.totalorder %s110, %s113
      %p122 = scmp.eq.s32.totalorder %s27, 2
      %p123 = por %p121, %p122
      %p124 = scmp.ne.s32.totalorder %s113, %s114
      %p125 = scmp.eq.s32.totalorder %s27, 0
      %p126 = por %p124, %p125
      %p127 = scmp.ne.s32.totalorder %s113, %s114
      %p128 = scmp.eq.s32.totalorder %s28, 2
      %p129 = por %p127, %p128
      %p131 = scmp.ne.s32.totalorder %s114, %s130
      %p132 = scmp.eq.s32.totalorder %s28, 0
      %p133 = por %p131, %p132
      %s135 = sadd.s32 %s134, 1
      %p138 = scmp.eq.s32.totalorder %s22, 2
      %p139 = scmp.ne.s32.totalorder %s134, %s136
      %p140 = scmp.eq.s32.totalorder %s22, 0
      %p141 = por %p139, %p140
      %p142 = scmp.ne.s32.totalorder %s134, %s136
      %p143 = scmp.eq.s32.totalorder %s27, 2
      %p144 = por %p142, %p143
      %p145 = scmp.ne.s32.totalorder %s136, %s137
      %p146 = scmp.eq.s32.totalorder %s27, 0
      %p147 = por %p145, %p146
      %p148 = scmp.ne.s32.totalorder %s136, %s137
      %p149 = scmp.eq.s32.totalorder %s28, 2
      %p150 = por %p148, %p149
      %p152 = scmp.ne.s32.totalorder %s137, %s151
      %p153 = scmp.eq.s32.totalorder %s28, 0
      %p154 = por %p152, %p153
      %s156 = sadd.s32 %s155, 1
      %p159 = scmp.eq.s32.totalorder %s22, 2
      %p160 = scmp.ne.s32.totalorder %s155, %s157
      %p161 = scmp.eq.s32.totalorder %s22, 0
      %p162 = por %p160, %p161
      %p163 = scmp.ne.s32.totalorder %s155, %s157
      %p164 = scmp.eq.s32.totalorder %s27, 2
      %p165 = por %p163, %p164
      %p166 = scmp.ne.s32.totalorder %s157, %s158
      %p167 = scmp.eq.s32.totalorder %s27, 0
      %p168 = por %p166, %p167
      %p169 = scmp.ne.s32.totalorder %s157, %s158
      %p170 = scmp.eq.s32.totalorder %s28, 2
      %p171 = por %p169, %p170
      %p173 = scmp.ne.s32.totalorder %s158, %s172
      %p174 = scmp.eq.s32.totalorder %s28, 0
      %p175 = por %p173, %p174
      %s177 = sadd.s32 %s176, 1
      %p180 = scmp.eq.s32.totalorder %s22, 2
      %p181 = scmp.ne.s32.totalorder %s176, %s178
      %p182 = scmp.eq.s32.totalorder %s22, 0
      %p183 = por %p181, %p182
      %p184 = scmp.ne.s32.totalorder %s176, %s178
      %p185 = scmp.eq.s32.totalorder %s27, 2
      %p186 = por %p184, %p185
      %p187 = scmp.ne.s32.totalorder %s178, %s179
      %p188 = scmp.eq.s32.totalorder %s27, 0
      %p189 = por %p187, %p188
      %p190 = scmp.ne.s32.totalorder %s178, %s179
      %p191 = scmp.eq.s32.totalorder %s28, 2
      %p192 = por %p190, %p191
      %p194 = scmp.ne.s32.totalorder %s179, %s193
      %p195 = scmp.eq.s32.totalorder %s28, 0
      %p196 = por %p194, %p195
      %s198 = sadd.s32 %s197, 1
      %p201 = scmp.eq.s32.totalorder %s22, 2
      %p202 = scmp.ne.s32.totalorder %s197, %s199
      %p203 = scmp.eq.s32.totalorder %s22, 0
      %p204 = por %p202, %p203
      %p205 = scmp.ne.s32.totalorder %s197, %s199
      %p206 = scmp.eq.s32.totalorder %s27, 2
      %p207 = por %p205, %p206
      %p208 = scmp.ne.s32.totalorder %s199, %s200
      %p209 = scmp.eq.s32.totalorder %s27, 0
      %p210 = por %p208, %p209
      %p211 = scmp.ne.s32.totalorder %s199, %s200
      %p212 = scmp.eq.s32.totalorder %s28, 2
      %p213 = por %p211, %p212
      %p215 = scmp.ne.s32.totalorder %s200, %s214
      %p216 = scmp.eq.s32.totalorder %s28, 0
      %p217 = por %p215, %p216
      %s219 = sadd.s32 %s218, 1
      %p222 = scmp.eq.s32.totalorder %s22, 2
      %p223 = scmp.ne.s32.totalorder %s218, %s220
      %p224 = scmp.eq.s32.totalorder %s22, 0
      %p225 = por %p223, %p224
      %p226 = scmp.ne.s32.totalorder %s218, %s220
      %p227 = scmp.eq.s32.totalorder %s27, 2
      %p228 = por %p226, %p227
      %p229 = scmp.ne.s32.totalorder %s220, %s221
      %p230 = scmp.eq.s32.totalorder %s27, 0
      %p231 = por %p229, %p230
      %p232 = scmp.ne.s32.totalorder %s220, %s221
      %p233 = scmp.eq.s32.totalorder %s28, 2
      %p234 = por %p232, %p233
      %p236 = scmp.ne.s32.totalorder %s221, %s235
      %p237 = scmp.eq.s32.totalorder %s28, 0
      %p238 = por %p236, %p237
      %s240 = sadd.s32 %s239, 1
      %p243 = scmp.eq.s32.totalorder %s22, 2
      %p244 = scmp.ne.s32.totalorder %s239, %s241
      %p245 = scmp.eq.s32.totalorder %s22, 0
      %p246 = por %p244, %p245
      %p247 = scmp.ne.s32.totalorder %s239, %s241
      %p248 = scmp.eq.s32.totalorder %s27, 2
      %p249 = por %p247, %p248
      %p250 = scmp.ne.s32.totalorder %s241, %s242
      %p251 = scmp.eq.s32.totalorder %s27, 0
      %p252 = por %p250, %p251
      %p253 = scmp.ne.s32.totalorder %s241, %s242
      %p254 = scmp.eq.s32.totalorder %s28, 2
      %p255 = por %p253, %p254
      %p257 = scmp.ne.s32.totalorder %s242, %s256
      %p258 = scmp.eq.s32.totalorder %s28, 0
      %p259 = por %p257, %p258
      %p260 = scmp.le.s32.totalorder 1, %s22
      %p261 = scmp.lt.s32.totalorder %s22, 4
      %p262 = pnand %p260, %p261
      %p263 = pneg %p262
      // Predicated region
      $region9: #{dgcn_apply.1} parent=5 // pred_check
        _
      $region10: #{dgcn_apply.1} parent=5 // pred_check_branch
        %265 = sbr.rel (%p262) target = $region12
      $region11: #{dgcn_apply.1} parent=5 // pred_region
        %s266 = ssub.s32 %s22, 1
        // Predicated region
        $region13: #{dgcn_apply.1} parent=11 // pred_check
          %p267 = pneg %p147
        $region14: #{dgcn_apply.1} parent=11 // pred_check_branch
          %269 = sbr.rel (%p267) target = $region16
        $region15: #{dgcn_apply.1} parent=11 // pred_region
          _
        $region16: #{dgcn_apply.1} parent=11 // pred_fallthru
          _
        // Predicated region
        $region17: #{dgcn_apply.1} parent=11 // pred_check
          %p270 = pneg %p168
        $region18: #{dgcn_apply.1} parent=11 // pred_check_branch
          %272 = sbr.rel (%p270) target = $region20
        $region19: #{dgcn_apply.1} parent=11 // pred_region
          _
        $region20: #{dgcn_apply.1} parent=11 // pred_fallthru
          _
        // Predicated region
        $region21: #{dgcn_apply.1} parent=11 // pred_check
          %p273 = pneg %p189
        $region22: #{dgcn_apply.1} parent=11 // pred_check_branch
          %275 = sbr.rel (%p273) target = $region24
        $region23: #{dgcn_apply.1} parent=11 // pred_region
          %s277 = ssub.s32 5120, 5120
          %278 = vsyncadd [#allocation9], %s277
          %s279 = sshll.u32 [#allocation8], 4
          %s280 = int_to_ptr.vmem [resolvable:$true] %s279
          %285 = dma.hbm_to_vmem [thread:$0]  %s6, 5120, %s280, [#allocation9], 64, 64, 4
        $region24: #{dgcn_apply.1} parent=11 // pred_fallthru
          _
        // Predicated region
        $region25: #{dgcn_apply.1} parent=11 // pred_check
          %p286 = pneg %p210
        $region26: #{dgcn_apply.1} parent=11 // pred_check_branch
          %288 = sbr.rel (%p286) target = $region28
        $region27: #{dgcn_apply.1} parent=11 // pred_region
          _
        $region28: #{dgcn_apply.1} parent=11 // pred_fallthru
          _
        // Predicated region
        $region29: #{dgcn_apply.1} parent=11 // pred_check
          %p289 = pneg %p231
        $region30: #{dgcn_apply.1} parent=11 // pred_check_branch
          %291 = sbr.rel (%p289) target = $region32
        $region31: #{dgcn_apply.1} parent=11 // pred_region
          %s293 = ssub.s32 1024, 1024
          %294 = vsyncadd [#allocation9], %s293
          %s295 = sshll.u32 [#allocation10], 4
          %s296 = int_to_ptr.vmem [resolvable:$true] %s295
          %301 = dma.hbm_to_vmem [thread:$0]  %s8, 1024, %s296, [#allocation9], 64, 64, 4
        $region32: #{dgcn_apply.1} parent=11 // pred_fallthru
          _
      $region12: #{dgcn_apply.1} parent=5 // pred_fallthru
        _
      %p302 = scmp.lt.s32.totalorder %s22, 3
      // Predicated region
      $region33: #{dgcn_apply.1} parent=5 // pred_check
        %p303 = pneg %p302
      $region34: #{dgcn_apply.1} parent=5 // pred_check_branch
        %305 = sbr.rel (%p303) target = $region36
      $region35: #{dgcn_apply.1} parent=5 // pred_region
        // Predicated region
        $region37: #{dgcn_apply.1} parent=35 // pred_check
          %p306 = pneg %p42
        $region38: #{dgcn_apply.1} parent=35 // pred_check_branch
          %308 = sbr.rel (%p306) target = $region40
        $region39: #{dgcn_apply.1} parent=35 // pred_region
          %s309 = sand.u32 %s32, 1
          %s310 = scalar_lea.sflag [#allocation4], %s309
          %s311 = sand.u32 %s32, 1
          %s312 = smul.addr %s311, 256
          %s313 = scalar_lea.vmem [#allocation3], %s312
          %s314 = smul.u32 2, %s22
          %s316 = ssub.s32 4096, 4096
          %317 = vsyncadd %s310, %s316
          %s318 = smul.addr %s314, 128
          %s319 = scalar_lea.hbm %s0, %s318
          %s320 = sshll.u32 %s313, 4
          %s321 = int_to_ptr.vmem [resolvable:$true] %s320
          %326 = dma.hbm_to_vmem [thread:$0]  %s319, 4096, %s321, %s310, 768, 256, 16
        $region40: #{dgcn_apply.1} parent=35 // pred_fallthru
          _
        // Predicated region
        $region41: #{dgcn_apply.1} parent=35 // pred_check
          %p327 = pneg %p68
        $region42: #{dgcn_apply.1} parent=35 // pred_check_branch
          %329 = sbr.rel (%p327) target = $region44
        $region43: #{dgcn_apply.1} parent=35 // pred_region
          %s330 = sand.u32 %s22, 1
          %s331 = scalar_lea.sflag [#allocation6], %s330
          %s332 = sand.u32 %s58, 1
          %s333 = smul.addr %s332, 256
          %s334 = scalar_lea.vmem [#allocation5], %s333
          %s335 = smul.u32 2, %s22
          %s337 = ssub.s32 4096, 4096
          %338 = vsyncadd %s331, %s337
          %s339 = smul.addr %s335, 128
          %s340 = scalar_lea.hbm %s1, %s339
          %s341 = sshll.u32 %s334, 4
          %s342 = int_to_ptr.vmem [resolvable:$true] %s341
          %347 = dma.hbm_to_vmem [thread:$0]  %s340, 4096, %s342, %s331, 768, 256, 16
        $region44: #{dgcn_apply.1} parent=35 // pred_fallthru
          _
        // Predicated region
        $region45: #{dgcn_apply.1} parent=35 // pred_check
          %p348 = pneg %p94
        $region46: #{dgcn_apply.1} parent=35 // pred_check_branch
          %350 = sbr.rel (%p348) target = $region48
        $region47: #{dgcn_apply.1} parent=35 // pred_region
          %s351 = smul.u32 32, %s22
          %p352 = scmp.lt.s32.totalorder %s351, 95
          %s353 = scalar_select %p352, %s351, 95
          %s354 = smul.addr %s353, 4
          %s355 = scalar_lea.vmem %s2, %s354
          %s356 = smul.u32 32, %s22
        $region48: #{dgcn_apply.1} parent=35 // pred_fallthru
          _
        // Predicated region
        $region49: #{dgcn_apply.1} parent=35 // pred_check
          %p357 = pneg %p120
        $region50: #{dgcn_apply.1} parent=35 // pred_check_branch
          %359 = sbr.rel (%p357) target = $region52
        $region51: #{dgcn_apply.1} parent=35 // pred_region
          %s360 = sand.u32 %s22, 1
          %s361 = scalar_lea.sflag [#allocation6], %s360
          %s362 = sand.u32 %s110, 1
          %s363 = smul.addr %s362, 128
          %s364 = scalar_lea.vmem [#allocation7], %s363
          %s365 = smul.u32 32, %s22
          %s367 = ssub.s32 2048, 2048
          %368 = vsyncadd %s361, %s367
          %s369 = smul.addr %s365, 64
          %s370 = scalar_lea.hbm %s3, %s369
          %s371 = sshll.u32 %s364, 4
          %s372 = int_to_ptr.vmem [resolvable:$true] %s371
          %377 = dma.hbm_to_vmem [thread:$0]  %s370, 2048, %s372, %s361, 64, 64, 4
        $region52: #{dgcn_apply.1} parent=35 // pred_fallthru
          _
      $region36: #{dgcn_apply.1} parent=5 // pred_fallthru
        _
      %p378 = scmp.le.s32.totalorder 1, %s22
      %p379 = scmp.lt.s32.totalorder %s22, 4
      %p380 = pnand %p378, %p379
      %p381 = pneg %p380
      // Predicated region
      $region53: #{dgcn_apply.1} parent=5 // pred_check
        _
      $region54: #{dgcn_apply.1} parent=5 // pred_check_branch
        %383 = sbr.rel (%p380) target = $region56
      $region55: #{dgcn_apply.1} parent=5 // pred_region
        %s384 = ssub.s32 %s22, 1
        %s385 = sand.u32 %s35, 1
        %s386 = scalar_lea.sflag [#allocation4], %s385
        %s387 = sand.u32 %s35, 1
        %s388 = smul.addr %s387, 256
        %s389 = scalar_lea.vmem [#allocation3], %s388
        // Predicated region
        $region57: #{dgcn_apply.1} parent=55 // pred_check
          %p390 = pneg %p48
        $region58: #{dgcn_apply.1} parent=55 // pred_check_branch
          %392 = sbr.rel (%p390) target = $region60
        $region59: #{dgcn_apply.1} parent=55 // pred_region
          %393 = dma.done %s386, 4096
        $region60: #{dgcn_apply.1} parent=55 // pred_fallthru
          _
        %s394 = sand.u32 %s27, 1
        %s395 = scalar_lea.sflag [#allocation6], %s394
        %s396 = sand.u32 %s61, 1
        %s397 = smul.addr %s396, 256
        %s398 = scalar_lea.vmem [#allocation5], %s397
        // Predicated region
        $region61: #{dgcn_apply.1} parent=55 // pred_check
          %p399 = pneg %p74
        $region62: #{dgcn_apply.1} parent=55 // pred_check_branch
          %401 = sbr.rel (%p399) target = $region64
        $region63: #{dgcn_apply.1} parent=55 // pred_region
          %402 = dma.done %s395, 4096
        $region64: #{dgcn_apply.1} parent=55 // pred_fallthru
          _
        %s403 = sand.u32 %s27, 1
        %s404 = scalar_lea.sflag [#allocation6], %s403
        %s405 = sand.u32 %s113, 1
        %s406 = smul.addr %s405, 128
        %s407 = scalar_lea.vmem [#allocation7], %s406
        // Predicated region
        $region65: #{dgcn_apply.1} parent=55 // pred_check
          %p408 = pneg %p126
        $region66: #{dgcn_apply.1} parent=55 // pred_check_branch
          %410 = sbr.rel (%p408) target = $region68
        $region67: #{dgcn_apply.1} parent=55 // pred_region
          %411 = dma.done %s404, 2048
        $region68: #{dgcn_apply.1} parent=55 // pred_fallthru
          _
        // Predicated region
        $region69: #{dgcn_apply.1} parent=55 // pred_check
          %p412 = pneg %p189
        $region70: #{dgcn_apply.1} parent=55 // pred_check_branch
          %414 = sbr.rel (%p412) target = $region72
        $region71: #{dgcn_apply.1} parent=55 // pred_region
          %415 = dma.done [#allocation9], 5120
        $region72: #{dgcn_apply.1} parent=55 // pred_fallthru
          _
        // Predicated region
        $region73: #{dgcn_apply.1} parent=55 // pred_check
          %p416 = pneg %p231
        $region74: #{dgcn_apply.1} parent=55 // pred_check_branch
          %418 = sbr.rel (%p416) target = $region76
        $region75: #{dgcn_apply.1} parent=55 // pred_region
          %419 = dma.done [#allocation9], 1024
        $region76: #{dgcn_apply.1} parent=55 // pred_fallthru
          _
        %s420 = sand.u32 %s35, 1
        %s421 = scalar_lea.sflag [#allocation4], %s420
        %s422 = sand.u32 %s35, 1
        %s423 = smul.addr %s422, 256
        %s424 = scalar_lea.vmem [#allocation3], %s423
        %p425 = pneg %p48
        %p426 = pneg %p45
        %s427 = sand.u32 %s27, 1
        %s428 = scalar_lea.sflag [#allocation6], %s427
        %s429 = sand.u32 %s61, 1
        %s430 = smul.addr %s429, 256
        %s431 = scalar_lea.vmem [#allocation5], %s430
        %p432 = pneg %p74
        %p433 = pneg %p71
        %s434 = smul.u32 32, %s27
        %p435 = scmp.lt.s32.totalorder %s434, 95
        %s436 = scalar_select %p435, %s434, 95
        %s437 = smul.addr %s436, 4
        %s438 = scalar_lea.vmem %s2, %s437
        %p439 = pneg %p100
        %p440 = pneg %p97
        %s441 = sand.u32 %s27, 1
        %s442 = scalar_lea.sflag [#allocation6], %s441
        %s443 = sand.u32 %s113, 1
        %s444 = smul.addr %s443, 128
        %s445 = scalar_lea.vmem [#allocation7], %s444
        %p446 = pneg %p126
        %p447 = pneg %p123
        %p448 = pneg %p147
        %p449 = pneg %p144
        %p450 = pneg %p168
        %p451 = pneg %p165
        %p452 = pneg %p189
        %p453 = pneg %p186
        %p454 = pneg %p210
        %p455 = pneg %p207
        %p456 = pneg %p231
        %p457 = pneg %p228
        %p458 = pneg %p252
        %p459 = pneg %p249
        %s460 = smul.u32 2, %s27
        %s461 = smul.u32 2, %s27
        %s462 = smul.u32 32, %s27
        %p463 = scmp.lt.s32.totalorder %s462, 95
        %s464 = scalar_select %p463, %s462, 95
        %s465 = smul.addr %s464, 4
        %s466 = scalar_lea.vmem %s2, %s465
        %s467 = smul.u32 32, %s27
        %s468 = smul.u32 32, %s27
        %p470 = scmp.eq.s32.totalorder %s27, 0
        // Predicated region
        $region77: #{dgcn_apply.1} parent=55 // pred_check
          %p471 = pneg %p470
        $region78: #{dgcn_apply.1} parent=55 // pred_check_branch
          %473 = sbr.rel (%p471) target = $region80
        $region79: #{dgcn_apply.1} parent=55 // pred_region
          %474 = vst [vmem:[#allocation2] sm:$0xff] 0.0
          %475 = vst [vmem:[#allocation2 + $0x8] sm:$0xff] 0.0
          %476 = vst [vmem:[#allocation2 + $0x10] sm:$0xff] 0.0
          %477 = vst [vmem:[#allocation2 + $0x18] sm:$0xff] 0.0
          %478 = vst [vmem:[#allocation2 + $0x20] sm:$0xff] 0.0
          %479 = vst [vmem:[#allocation2 + $0x28] sm:$0xff] 0.0
          %480 = vst [vmem:[#allocation2 + $0x30] sm:$0xff] 0.0
          %481 = vst [vmem:[#allocation2 + $0x38] sm:$0xff] 0.0
          %482 = vst [vmem:[#allocation2 + $0x40] sm:$0xff] 0.0
          %483 = vst [vmem:[#allocation2 + $0x48] sm:$0xff] 0.0
          %484 = vst [vmem:[#allocation2 + $0x50] sm:$0xff] 0.0
          %485 = vst [vmem:[#allocation2 + $0x58] sm:$0xff] 0.0
          %486 = vst [vmem:[#allocation2 + $0x60] sm:$0xff] 0.0
          %487 = vst [vmem:[#allocation2 + $0x68] sm:$0xff] 0.0
          %488 = vst [vmem:[#allocation2 + $0x70] sm:$0xff] 0.0
          %489 = vst [vmem:[#allocation2 + $0x78] sm:$0xff] 0.0
        $region80: #{dgcn_apply.1} parent=55 // pred_fallthru
          _
        %v490 = vld [vmem:[#allocation2] sm:$0xff]
        %v491 = vld [vmem:[#allocation2 + $0x8] sm:$0xff]
        %v492 = vld [vmem:[#allocation2 + $0x10] sm:$0xff]
        %v493 = vld [vmem:[#allocation2 + $0x18] sm:$0xff]
        %v494 = vld [vmem:[#allocation2 + $0x20] sm:$0xff]
        %v495 = vld [vmem:[#allocation2 + $0x28] sm:$0xff]
        %v496 = vld [vmem:[#allocation2 + $0x30] sm:$0xff]
        %v497 = vld [vmem:[#allocation2 + $0x38] sm:$0xff]
        %v498 = vld [vmem:[#allocation2 + $0x40] sm:$0xff]
        %v499 = vld [vmem:[#allocation2 + $0x48] sm:$0xff]
        %v500 = vld [vmem:[#allocation2 + $0x50] sm:$0xff]
        %v501 = vld [vmem:[#allocation2 + $0x58] sm:$0xff]
        %v502 = vld [vmem:[#allocation2 + $0x60] sm:$0xff]
        %v503 = vld [vmem:[#allocation2 + $0x68] sm:$0xff]
        %v504 = vld [vmem:[#allocation2 + $0x70] sm:$0xff]
        %v505 = vld [vmem:[#allocation2 + $0x78] sm:$0xff]
        %v506 = vld [vmem:[%s389] sm:$0xff]
        %v507 = vld [vmem:[%s389 + $0x8] sm:$0xff]
        %v508 = vld [vmem:[%s389 + $0x10] sm:$0xff]
        %v509 = vld [vmem:[%s389 + $0x18] sm:$0xff]
        %v510 = vld [vmem:[%s389 + $0x20] sm:$0xff]
        %v511 = vld [vmem:[%s389 + $0x28] sm:$0xff]
        %v512 = vld [vmem:[%s389 + $0x30] sm:$0xff]
        %v513 = vld [vmem:[%s389 + $0x38] sm:$0xff]
        %v514 = vld [vmem:[%s389 + $0x40] sm:$0xff]
        %v515 = vld [vmem:[%s389 + $0x48] sm:$0xff]
        %v516 = vld [vmem:[%s389 + $0x50] sm:$0xff]
        %v517 = vld [vmem:[%s389 + $0x58] sm:$0xff]
        %v518 = vld [vmem:[%s389 + $0x60] sm:$0xff]
        %v519 = vld [vmem:[%s389 + $0x68] sm:$0xff]
        %v520 = vld [vmem:[%s389 + $0x70] sm:$0xff]
        %v521 = vld [vmem:[%s389 + $0x78] sm:$0xff]
        %v522 = vld [vmem:[%s389 + $0x80] sm:$0xff]
        %v523 = vld [vmem:[%s389 + $0x88] sm:$0xff]
        %v524 = vld [vmem:[%s389 + $0x90] sm:$0xff]
        %v525 = vld [vmem:[%s389 + $0x98] sm:$0xff]
        %v526 = vld [vmem:[%s389 + $0xa0] sm:$0xff]
        %v527 = vld [vmem:[%s389 + $0xa8] sm:$0xff]
        %v528 = vld [vmem:[%s389 + $0xb0] sm:$0xff]
        %v529 = vld [vmem:[%s389 + $0xb8] sm:$0xff]
        %v530 = vld [vmem:[%s389 + $0xc0] sm:$0xff]
        %v531 = vld [vmem:[%s389 + $0xc8] sm:$0xff]
        %v532 = vld [vmem:[%s389 + $0xd0] sm:$0xff]
        %v533 = vld [vmem:[%s389 + $0xd8] sm:$0xff]
        %v534 = vld [vmem:[%s389 + $0xe0] sm:$0xff]
        %v535 = vld [vmem:[%s389 + $0xe8] sm:$0xff]
        %v536 = vld [vmem:[%s389 + $0xf0] sm:$0xff]
        %v537 = vld [vmem:[%s389 + $0xf8] sm:$0xff]
        %v538 = vld [vmem:[%s466] sm:$0xf]
        %v539 = vld [vmem:[%s466 + $0x4] sm:$0xf]
        %v540 = vld [vmem:[%s466 + $0x8] sm:$0xf]
        %v541 = vld [vmem:[%s466 + $0xc] sm:$0xf]
        %v542 = vld [vmem:[%s466 + $0x10] sm:$0xf]
        %v543 = vld [vmem:[%s466 + $0x14] sm:$0xf]
        %v544 = vld [vmem:[%s466 + $0x18] sm:$0xf]
        %v545 = vld [vmem:[%s466 + $0x1c] sm:$0xf]
        %v546 = vld [vmem:[%s466 + $0x20] sm:$0xf]
        %v547 = vld [vmem:[%s466 + $0x24] sm:$0xf]
        %v548 = vld [vmem:[%s466 + $0x28] sm:$0xf]
        %v549 = vld [vmem:[%s466 + $0x2c] sm:$0xf]
        %v550 = vld [vmem:[%s466 + $0x30] sm:$0xf]
        %v551 = vld [vmem:[%s466 + $0x34] sm:$0xf]
        %v552 = vld [vmem:[%s466 + $0x38] sm:$0xf]
        %v553 = vld [vmem:[%s466 + $0x3c] sm:$0xf]
        %v554 = vld [vmem:[%s466 + $0x40] sm:$0xf]
        %v555 = vld [vmem:[%s466 + $0x44] sm:$0xf]
        %v556 = vld [vmem:[%s466 + $0x48] sm:$0xf]
        %v557 = vld [vmem:[%s466 + $0x4c] sm:$0xf]
        %v558 = vld [vmem:[%s466 + $0x50] sm:$0xf]
        %v559 = vld [vmem:[%s466 + $0x54] sm:$0xf]
        %v560 = vld [vmem:[%s466 + $0x58] sm:$0xf]
        %v561 = vld [vmem:[%s466 + $0x5c] sm:$0xf]
        %v562 = vld [vmem:[%s466 + $0x60] sm:$0xf]
        %v563 = vld [vmem:[%s466 + $0x64] sm:$0xf]
        %v564 = vld [vmem:[%s466 + $0x68] sm:$0xf]
        %v565 = vld [vmem:[%s466 + $0x6c] sm:$0xf]
        %v566 = vld [vmem:[%s466 + $0x70] sm:$0xf]
        %v567 = vld [vmem:[%s466 + $0x74] sm:$0xf]
        %v568 = vld [vmem:[%s466 + $0x78] sm:$0xf]
        %v569 = vld [vmem:[%s466 + $0x7c] sm:$0xf]
        %v570 = vpack.c.bf16 %v508, %v506
        %v571 = vpack.c.bf16 %v509, %v507
        %v572 = vpack.c.bf16 %v512, %v510
        %v573 = vpack.c.bf16 %v513, %v511
        %v574 = vpack.c.bf16 %v516, %v514
        %v575 = vpack.c.bf16 %v517, %v515
        %v576 = vpack.c.bf16 %v520, %v518
        %v577 = vpack.c.bf16 %v521, %v519
        %v578 = vpack.c.bf16 %v524, %v522
        %v579 = vpack.c.bf16 %v525, %v523
        %v580 = vpack.c.bf16 %v528, %v526
        %v581 = vpack.c.bf16 %v529, %v527
        %v582 = vpack.c.bf16 %v532, %v530
        %v583 = vpack.c.bf16 %v533, %v531
        %v584 = vpack.c.bf16 %v536, %v534
        %v585 = vpack.c.bf16 %v537, %v535
        %v586 = vld [vmem:[%s398] sm:$0xff]
        %v587 = vld [vmem:[%s398 + $0x8] sm:$0xff]
        %v588 = vld [vmem:[%s398 + $0x10] sm:$0xff]
        %v589 = vld [vmem:[%s398 + $0x18] sm:$0xff]
        %v590 = vld [vmem:[%s398 + $0x20] sm:$0xff]
        %v591 = vld [vmem:[%s398 + $0x28] sm:$0xff]
        %v592 = vld [vmem:[%s398 + $0x30] sm:$0xff]
        %v593 = vld [vmem:[%s398 + $0x38] sm:$0xff]
        %v594 = vld [vmem:[%s398 + $0x40] sm:$0xff]
        %v595 = vld [vmem:[%s398 + $0x48] sm:$0xff]
        %v596 = vld [vmem:[%s398 + $0x50] sm:$0xff]
        %v597 = vld [vmem:[%s398 + $0x58] sm:$0xff]
        %v598 = vld [vmem:[%s398 + $0x60] sm:$0xff]
        %v599 = vld [vmem:[%s398 + $0x68] sm:$0xff]
        %v600 = vld [vmem:[%s398 + $0x70] sm:$0xff]
        %v601 = vld [vmem:[%s398 + $0x78] sm:$0xff]
        %v602 = vld [vmem:[%s398 + $0x80] sm:$0xff]
        %v603 = vld [vmem:[%s398 + $0x88] sm:$0xff]
        %v604 = vld [vmem:[%s398 + $0x90] sm:$0xff]
        %v605 = vld [vmem:[%s398 + $0x98] sm:$0xff]
        %v606 = vld [vmem:[%s398 + $0xa0] sm:$0xff]
        %v607 = vld [vmem:[%s398 + $0xa8] sm:$0xff]
        %v608 = vld [vmem:[%s398 + $0xb0] sm:$0xff]
        %v609 = vld [vmem:[%s398 + $0xb8] sm:$0xff]
        %v610 = vld [vmem:[%s398 + $0xc0] sm:$0xff]
        %v611 = vld [vmem:[%s398 + $0xc8] sm:$0xff]
        %v612 = vld [vmem:[%s398 + $0xd0] sm:$0xff]
        %v613 = vld [vmem:[%s398 + $0xd8] sm:$0xff]
        %v614 = vld [vmem:[%s398 + $0xe0] sm:$0xff]
        %v615 = vld [vmem:[%s398 + $0xe8] sm:$0xff]
        %v616 = vld [vmem:[%s398 + $0xf0] sm:$0xff]
        %v617 = vld [vmem:[%s398 + $0xf8] sm:$0xff]
        %v618 = vld [vmem:[%s407] sm:$0xf]
        %v619 = vld [vmem:[%s407 + $0x4] sm:$0xf]
        %v620 = vld [vmem:[%s407 + $0x8] sm:$0xf]
        %v621 = vld [vmem:[%s407 + $0xc] sm:$0xf]
        %v622 = vld [vmem:[%s407 + $0x10] sm:$0xf]
        %v623 = vld [vmem:[%s407 + $0x14] sm:$0xf]
        %v624 = vld [vmem:[%s407 + $0x18] sm:$0xf]
        %v625 = vld [vmem:[%s407 + $0x1c] sm:$0xf]
        %v626 = vld [vmem:[%s407 + $0x20] sm:$0xf]
        %v627 = vld [vmem:[%s407 + $0x24] sm:$0xf]
        %v628 = vld [vmem:[%s407 + $0x28] sm:$0xf]
        %v629 = vld [vmem:[%s407 + $0x2c] sm:$0xf]
        %v630 = vld [vmem:[%s407 + $0x30] sm:$0xf]
        %v631 = vld [vmem:[%s407 + $0x34] sm:$0xf]
        %v632 = vld [vmem:[%s407 + $0x38] sm:$0xf]
        %v633 = vld [vmem:[%s407 + $0x3c] sm:$0xf]
        %v634 = vld [vmem:[%s407 + $0x40] sm:$0xf]
        %v635 = vld [vmem:[%s407 + $0x44] sm:$0xf]
        %v636 = vld [vmem:[%s407 + $0x48] sm:$0xf]
        %v637 = vld [vmem:[%s407 + $0x4c] sm:$0xf]
        %v638 = vld [vmem:[%s407 + $0x50] sm:$0xf]
        %v639 = vld [vmem:[%s407 + $0x54] sm:$0xf]
        %v640 = vld [vmem:[%s407 + $0x58] sm:$0xf]
        %v641 = vld [vmem:[%s407 + $0x5c] sm:$0xf]
        %v642 = vld [vmem:[%s407 + $0x60] sm:$0xf]
        %v643 = vld [vmem:[%s407 + $0x64] sm:$0xf]
        %v644 = vld [vmem:[%s407 + $0x68] sm:$0xf]
        %v645 = vld [vmem:[%s407 + $0x6c] sm:$0xf]
        %v646 = vld [vmem:[%s407 + $0x70] sm:$0xf]
        %v647 = vld [vmem:[%s407 + $0x74] sm:$0xf]
        %v648 = vld [vmem:[%s407 + $0x78] sm:$0xf]
        %v649 = vld [vmem:[%s407 + $0x7c] sm:$0xf]
        %v650 = vpack.c.bf16 %v588, %v586
        %v651 = vpack.c.bf16 %v589, %v587
        %v652 = vpack.c.bf16 %v592, %v590
        %v653 = vpack.c.bf16 %v593, %v591
        %v654 = vpack.c.bf16 %v596, %v594
        %v655 = vpack.c.bf16 %v597, %v595
        %v656 = vpack.c.bf16 %v600, %v598
        %v657 = vpack.c.bf16 %v601, %v599
        %v658 = vpack.c.bf16 %v604, %v602
        %v659 = vpack.c.bf16 %v605, %v603
        %v660 = vpack.c.bf16 %v608, %v606
        %v661 = vpack.c.bf16 %v609, %v607
        %v662 = vpack.c.bf16 %v612, %v610
        %v663 = vpack.c.bf16 %v613, %v611
        %v664 = vpack.c.bf16 %v616, %v614
        %v665 = vpack.c.bf16 %v617, %v615
        %v698 = vunpack.c.l.b16 %v618
        %v699 = vunpack.c.l.b16 %v619
        %v700 = vunpack.c.l.b16 %v620
        %v701 = vunpack.c.l.b16 %v621
        %v702 = vunpack.c.l.b16 %v622
        %v703 = vunpack.c.l.b16 %v623
        %v704 = vunpack.c.l.b16 %v624
        %v705 = vunpack.c.l.b16 %v625
        %v706 = vunpack.c.l.b16 %v626
        %v707 = vunpack.c.l.b16 %v627
        %v708 = vunpack.c.l.b16 %v628
        %v709 = vunpack.c.l.b16 %v629
        %v710 = vunpack.c.l.b16 %v630
        %v711 = vunpack.c.l.b16 %v631
        %v712 = vunpack.c.l.b16 %v632
        %v713 = vunpack.c.l.b16 %v633
        %v714 = vunpack.c.l.b16 %v634
        %v715 = vunpack.c.l.b16 %v635
        %v716 = vunpack.c.l.b16 %v636
        %v717 = vunpack.c.l.b16 %v637
        %v718 = vunpack.c.l.b16 %v638
        %v719 = vunpack.c.l.b16 %v639
        %v720 = vunpack.c.l.b16 %v640
        %v721 = vunpack.c.l.b16 %v641
        %v722 = vunpack.c.l.b16 %v642
        %v723 = vunpack.c.l.b16 %v643
        %v724 = vunpack.c.l.b16 %v644
        %v725 = vunpack.c.l.b16 %v645
        %v726 = vunpack.c.l.b16 %v646
        %v727 = vunpack.c.l.b16 %v647
        %v728 = vunpack.c.l.b16 %v648
        %v729 = vunpack.c.l.b16 %v649
        %v730 = vpack.c.b16 %v699, %v698
        %v731 = vpack.c.b16 %v701, %v700
        %v732 = vpack.c.b16 %v703, %v702
        %v733 = vpack.c.b16 %v705, %v704
        %v734 = vpack.c.b16 %v707, %v706
        %v735 = vpack.c.b16 %v709, %v708
        %v736 = vpack.c.b16 %v711, %v710
        %v737 = vpack.c.b16 %v713, %v712
        %v738 = vpack.c.b16 %v715, %v714
        %v739 = vpack.c.b16 %v717, %v716
        %v740 = vpack.c.b16 %v719, %v718
        %v741 = vpack.c.b16 %v721, %v720
        %v742 = vpack.c.b16 %v723, %v722
        %v743 = vpack.c.b16 %v725, %v724
        %v744 = vpack.c.b16 %v727, %v726
        %v745 = vpack.c.b16 %v729, %v728
        %762 = vmatprep.subr.bf16.mxu0 0
        %763 = vmatpush1.bf16.msra.mxu0 %v737
        %764 = vmatprep.subr.bf16.mxu0 0
        %765 = vmatpush1.bf16.msra.mxu0 %v736
        %766 = vmatprep.subr.bf16.mxu0 0
        %767 = vmatpush1.bf16.msra.mxu0 %v735
        %768 = vmatprep.subr.bf16.mxu0 0
        %769 = vmatpush1.bf16.msra.mxu0 %v734
        %770 = vmatprep.subr.bf16.mxu0 0
        %771 = vmatpush1.bf16.msra.mxu0 %v733
        %772 = vmatprep.subr.bf16.mxu0 0
        %773 = vmatpush1.bf16.msra.mxu0 %v732
        %774 = vmatprep.subr.bf16.mxu0 0
        %775 = vmatpush1.bf16.msra.mxu0 %v731
        %776 = vmatprep.subr.bf16.mxu0 0
        %777 = vmatpush1.bf16.msra.mxu0 %v730
        %778 = vmatprep.subr.bf16.mxu0 0
        %779 = vmatpush2.bf16.msra.mxu0 %v745
        %780 = vmatprep.subr.bf16.mxu0 0
        %781 = vmatpush2.bf16.msra.mxu0 %v744
        %782 = vmatprep.subr.bf16.mxu0 0
        %783 = vmatpush2.bf16.msra.mxu0 %v743
        %784 = vmatprep.subr.bf16.mxu0 0
        %785 = vmatpush2.bf16.msra.mxu0 %v742
        %786 = vmatprep.subr.bf16.mxu0 0
        %787 = vmatpush2.bf16.msra.mxu0 %v741
        %788 = vmatprep.subr.bf16.mxu0 0
        %789 = vmatpush2.bf16.msra.mxu0 %v740
        %790 = vmatprep.subr.bf16.mxu0 0
        %791 = vmatpush2.bf16.msra.mxu0 %v739
        %792 = vmatprep.subr.bf16.mxu0 0
        %793 = vmatpush2.bf16.msra.mxu0 %v738
        %794 = vmatprep.mubr.bf16.mxu0 %v651
        %795 = vmatmul.mubr.bf16.gmra.mxu0 %v650
        %v796 = vpop.f32.mrf.mxu0
        %v797 = vadd.f32 0.0, %v796
        %v798 = vpop.f32.mrf.mxu0
        %v799 = vpop.f32.mrf.mxu0
        %v800 = vadd.f32 0.0, %v799
        %v801 = vpop.f32.mrf.mxu0
        %802 = vmatprep.mubr.bf16.mxu0 %v653
        %803 = vmatmul.mubr.bf16.gmra.mxu0 %v652
        %v804 = vpop.f32.mrf.mxu0
        %v805 = vadd.f32 0.0, %v804
        %v806 = vpop.f32.mrf.mxu0
        %v807 = vpop.f32.mrf.mxu0
        %v808 = vadd.f32 0.0, %v807
        %v809 = vpop.f32.mrf.mxu0
        %810 = vmatprep.mubr.bf16.mxu0 %v655
        %811 = vmatmul.mubr.bf16.gmra.mxu0 %v654
        %v812 = vpop.f32.mrf.mxu0
        %v813 = vadd.f32 0.0, %v812
        %v814 = vpop.f32.mrf.mxu0
        %v815 = vpop.f32.mrf.mxu0
        %v816 = vadd.f32 0.0, %v815
        %v817 = vpop.f32.mrf.mxu0
        %818 = vmatprep.mubr.bf16.mxu0 %v657
        %819 = vmatmul.mubr.bf16.gmra.mxu0 %v656
        %v820 = vpop.f32.mrf.mxu0
        %v821 = vadd.f32 0.0, %v820
        %v822 = vpop.f32.mrf.mxu0
        %v823 = vpop.f32.mrf.mxu0
        %v824 = vadd.f32 0.0, %v823
        %v825 = vpop.f32.mrf.mxu0
        %826 = vmatprep.mubr.bf16.mxu0 %v659
        %827 = vmatmul.mubr.bf16.gmra.mxu0 %v658
        %v828 = vpop.f32.mrf.mxu0
        %v829 = vadd.f32 0.0, %v828
        %v830 = vpop.f32.mrf.mxu0
        %v831 = vpop.f32.mrf.mxu0
        %v832 = vadd.f32 0.0, %v831
        %v833 = vpop.f32.mrf.mxu0
        %834 = vmatprep.mubr.bf16.mxu0 %v661
        %835 = vmatmul.mubr.bf16.gmra.mxu0 %v660
        %v836 = vpop.f32.mrf.mxu0
        %v837 = vadd.f32 0.0, %v836
        %v838 = vpop.f32.mrf.mxu0
        %v839 = vpop.f32.mrf.mxu0
        %v840 = vadd.f32 0.0, %v839
        %v841 = vpop.f32.mrf.mxu0
        %842 = vmatprep.mubr.bf16.mxu0 %v663
        %843 = vmatmul.mubr.bf16.gmra.mxu0 %v662
        %v844 = vpop.f32.mrf.mxu0
        %v845 = vadd.f32 0.0, %v844
        %v846 = vpop.f32.mrf.mxu0
        %v847 = vpop.f32.mrf.mxu0
        %v848 = vadd.f32 0.0, %v847
        %v849 = vpop.f32.mrf.mxu0
        %850 = vmatprep.mubr.bf16.mxu0 %v665
        %851 = vmatmul.mubr.bf16.gmra.mxu0 %v664
        %v852 = vpop.f32.mrf.mxu0
        %v853 = vadd.f32 0.0, %v852
        %v854 = vpop.f32.mrf.mxu0
        %v855 = vpop.f32.mrf.mxu0
        %v856 = vadd.f32 0.0, %v855
        %v857 = vpop.f32.mrf.mxu0
        %858 = vdwg.mxu0
        %v891 = vunpack.c.l.b16 %v538
        %v892 = vunpack.c.l.b16 %v539
        %v893 = vunpack.c.l.b16 %v540
        %v894 = vunpack.c.l.b16 %v541
        %v895 = vunpack.c.l.b16 %v542
        %v896 = vunpack.c.l.b16 %v543
        %v897 = vunpack.c.l.b16 %v544
        %v898 = vunpack.c.l.b16 %v545
        %v899 = vunpack.c.l.b16 %v546
        %v900 = vunpack.c.l.b16 %v547
        %v901 = vunpack.c.l.b16 %v548
        %v902 = vunpack.c.l.b16 %v549
        %v903 = vunpack.c.l.b16 %v550
        %v904 = vunpack.c.l.b16 %v551
        %v905 = vunpack.c.l.b16 %v552
        %v906 = vunpack.c.l.b16 %v553
        %v907 = vunpack.c.l.b16 %v554
        %v908 = vunpack.c.l.b16 %v555
        %v909 = vunpack.c.l.b16 %v556
        %v910 = vunpack.c.l.b16 %v557
        %v911 = vunpack.c.l.b16 %v558
        %v912 = vunpack.c.l.b16 %v559
        %v913 = vunpack.c.l.b16 %v560
        %v914 = vunpack.c.l.b16 %v561
        %v915 = vunpack.c.l.b16 %v562
        %v916 = vunpack.c.l.b16 %v563
        %v917 = vunpack.c.l.b16 %v564
        %v918 = vunpack.c.l.b16 %v565
        %v919 = vunpack.c.l.b16 %v566
        %v920 = vunpack.c.l.b16 %v567
        %v921 = vunpack.c.l.b16 %v568
        %v922 = vunpack.c.l.b16 %v569
        %v923 = vpack.c.b16 %v892, %v891
        %v924 = vpack.c.b16 %v894, %v893
        %v925 = vpack.c.b16 %v896, %v895
        %v926 = vpack.c.b16 %v898, %v897
        %v927 = vpack.c.b16 %v900, %v899
        %v928 = vpack.c.b16 %v902, %v901
        %v929 = vpack.c.b16 %v904, %v903
        %v930 = vpack.c.b16 %v906, %v905
        %v931 = vpack.c.b16 %v908, %v907
        %v932 = vpack.c.b16 %v910, %v909
        %v933 = vpack.c.b16 %v912, %v911
        %v934 = vpack.c.b16 %v914, %v913
        %v935 = vpack.c.b16 %v916, %v915
        %v936 = vpack.c.b16 %v918, %v917
        %v937 = vpack.c.b16 %v920, %v919
        %v938 = vpack.c.b16 %v922, %v921
        %955 = vmatprep.subr.bf16.mxu0 0
        %956 = vmatpush1.bf16.msra.mxu0 %v930
        %957 = vmatprep.subr.bf16.mxu0 0
        %958 = vmatpush1.bf16.msra.mxu0 %v929
        %959 = vmatprep.subr.bf16.mxu0 0
        %960 = vmatpush1.bf16.msra.mxu0 %v928
        %961 = vmatprep.subr.bf16.mxu0 0
        %962 = vmatpush1.bf16.msra.mxu0 %v927
        %963 = vmatprep.subr.bf16.mxu0 0
        %964 = vmatpush1.bf16.msra.mxu0 %v926
        %965 = vmatprep.subr.bf16.mxu0 0
        %966 = vmatpush1.bf16.msra.mxu0 %v925
        %967 = vmatprep.subr.bf16.mxu0 0
        %968 = vmatpush1.bf16.msra.mxu0 %v924
        %969 = vmatprep.subr.bf16.mxu0 0
        %970 = vmatpush1.bf16.msra.mxu0 %v923
        %971 = vmatprep.subr.bf16.mxu0 0
        %972 = vmatpush2.bf16.msra.mxu0 %v938
        %973 = vmatprep.subr.bf16.mxu0 0
        %974 = vmatpush2.bf16.msra.mxu0 %v937
        %975 = vmatprep.subr.bf16.mxu0 0
        %976 = vmatpush2.bf16.msra.mxu0 %v936
        %977 = vmatprep.subr.bf16.mxu0 0
        %978 = vmatpush2.bf16.msra.mxu0 %v935
        %979 = vmatprep.subr.bf16.mxu0 0
        %980 = vmatpush2.bf16.msra.mxu0 %v934
        %981 = vmatprep.subr.bf16.mxu0 0
        %982 = vmatpush2.bf16.msra.mxu0 %v933
        %983 = vmatprep.subr.bf16.mxu0 0
        %984 = vmatpush2.bf16.msra.mxu0 %v932
        %985 = vmatprep.subr.bf16.mxu0 0
        %986 = vmatpush2.bf16.msra.mxu0 %v931
        %987 = vmatprep.mubr.bf16.mxu0 %v571
        %988 = vmatmul.mubr.bf16.gmra.mxu0 %v570
        %v989 = vpop.f32.mrf.mxu0
        %v990 = vadd.f32 %v797, %v989
        %v991 = vpop.f32.mrf.mxu0
        %v992 = vpop.f32.mrf.mxu0
        %v993 = vadd.f32 %v800, %v992
        %v994 = vpop.f32.mrf.mxu0
        %995 = vmatprep.mubr.bf16.mxu0 %v573
        %996 = vmatmul.mubr.bf16.gmra.mxu0 %v572
        %v997 = vpop.f32.mrf.mxu0
        %v998 = vadd.f32 %v805, %v997
        %v999 = vpop.f32.mrf.mxu0
        %v1000 = vpop.f32.mrf.mxu0
        %v1001 = vadd.f32 %v808, %v1000
        %v1002 = vpop.f32.mrf.mxu0
        %1003 = vmatprep.mubr.bf16.mxu0 %v575
        %1004 = vmatmul.mubr.bf16.gmra.mxu0 %v574
        %v1005 = vpop.f32.mrf.mxu0
        %v1006 = vadd.f32 %v813, %v1005
        %v1007 = vpop.f32.mrf.mxu0
        %v1008 = vpop.f32.mrf.mxu0
        %v1009 = vadd.f32 %v816, %v1008
        %v1010 = vpop.f32.mrf.mxu0
        %1011 = vmatprep.mubr.bf16.mxu0 %v577
        %1012 = vmatmul.mubr.bf16.gmra.mxu0 %v576
        %v1013 = vpop.f32.mrf.mxu0
        %v1014 = vadd.f32 %v821, %v1013
        %v1015 = vpop.f32.mrf.mxu0
        %v1016 = vpop.f32.mrf.mxu0
        %v1017 = vadd.f32 %v824, %v1016
        %v1018 = vpop.f32.mrf.mxu0
        %1019 = vmatprep.mubr.bf16.mxu0 %v579
        %1020 = vmatmul.mubr.bf16.gmra.mxu0 %v578
        %v1021 = vpop.f32.mrf.mxu0
        %v1022 = vadd.f32 %v829, %v1021
        %v1023 = vpop.f32.mrf.mxu0
        %v1024 = vpop.f32.mrf.mxu0
        %v1025 = vadd.f32 %v832, %v1024
        %v1026 = vpop.f32.mrf.mxu0
        %1027 = vmatprep.mubr.bf16.mxu0 %v581
        %1028 = vmatmul.mubr.bf16.gmra.mxu0 %v580
        %v1029 = vpop.f32.mrf.mxu0
        %v1030 = vadd.f32 %v837, %v1029
        %v1031 = vpop.f32.mrf.mxu0
        %v1032 = vpop.f32.mrf.mxu0
        %v1033 = vadd.f32 %v840, %v1032
        %v1034 = vpop.f32.mrf.mxu0
        %1035 = vmatprep.mubr.bf16.mxu0 %v583
        %1036 = vmatmul.mubr.bf16.gmra.mxu0 %v582
        %v1037 = vpop.f32.mrf.mxu0
        %v1038 = vadd.f32 %v845, %v1037
        %v1039 = vpop.f32.mrf.mxu0
        %v1040 = vpop.f32.mrf.mxu0
        %v1041 = vadd.f32 %v848, %v1040
        %v1042 = vpop.f32.mrf.mxu0
        %1043 = vmatprep.mubr.bf16.mxu0 %v585
        %1044 = vmatmul.mubr.bf16.gmra.mxu0 %v584
        %v1045 = vpop.f32.mrf.mxu0
        %v1046 = vadd.f32 %v853, %v1045
        %v1047 = vpop.f32.mrf.mxu0
        %v1048 = vpop.f32.mrf.mxu0
        %v1049 = vadd.f32 %v856, %v1048
        %v1050 = vpop.f32.mrf.mxu0
        %1051 = vdwg.mxu0
        %v1052 = vadd.f32 %v490, %v990
        %v1053 = vadd.f32 %v491, %v993
        %v1054 = vadd.f32 %v492, %v998
        %v1055 = vadd.f32 %v493, %v1001
        %v1056 = vadd.f32 %v494, %v1006
        %v1057 = vadd.f32 %v495, %v1009
        %v1058 = vadd.f32 %v496, %v1014
        %v1059 = vadd.f32 %v497, %v1017
        %v1060 = vadd.f32 %v498, %v1022
        %v1061 = vadd.f32 %v499, %v1025
        %v1062 = vadd.f32 %v500, %v1030
        %v1063 = vadd.f32 %v501, %v1033
        %v1064 = vadd.f32 %v502, %v1038
        %v1065 = vadd.f32 %v503, %v1041
        %v1066 = vadd.f32 %v504, %v1046
        %v1067 = vadd.f32 %v505, %v1049
        %1068 = vst [vmem:[#allocation2] sm:$0xff] %v1052
        %1069 = vst [vmem:[#allocation2 + $0x8] sm:$0xff] %v1053
        %1070 = vst [vmem:[#allocation2 + $0x10] sm:$0xff] %v1054
        %1071 = vst [vmem:[#allocation2 + $0x18] sm:$0xff] %v1055
        %1072 = vst [vmem:[#allocation2 + $0x20] sm:$0xff] %v1056
        %1073 = vst [vmem:[#allocation2 + $0x28] sm:$0xff] %v1057
        %1074 = vst [vmem:[#allocation2 + $0x30] sm:$0xff] %v1058
        %1075 = vst [vmem:[#allocation2 + $0x38] sm:$0xff] %v1059
        %1076 = vst [vmem:[#allocation2 + $0x40] sm:$0xff] %v1060
        %1077 = vst [vmem:[#allocation2 + $0x48] sm:$0xff] %v1061
        %1078 = vst [vmem:[#allocation2 + $0x50] sm:$0xff] %v1062
        %1079 = vst [vmem:[#allocation2 + $0x58] sm:$0xff] %v1063
        %1080 = vst [vmem:[#allocation2 + $0x60] sm:$0xff] %v1064
        %1081 = vst [vmem:[#allocation2 + $0x68] sm:$0xff] %v1065
        %1082 = vst [vmem:[#allocation2 + $0x70] sm:$0xff] %v1066
        %1083 = vst [vmem:[#allocation2 + $0x78] sm:$0xff] %v1067
        %p1084 = scmp.eq.s32.totalorder %s27, 2
        // Predicated region
        $region81: #{dgcn_apply.1} parent=55 // pred_check
          %p1085 = pneg %p1084
        $region82: #{dgcn_apply.1} parent=55 // pred_check_branch
          %1087 = sbr.rel (%p1085) target = $region84
        $region83: #{dgcn_apply.1} parent=55 // pred_region
          %v1088 = vld [vmem:[%s7] sm:$0xff]
          %v1089 = vld [vmem:[#allocation2] sm:$0xff]
          %v1090 = vld [vmem:[#allocation2 + $0x8] sm:$0xff]
          %v1091 = vld [vmem:[#allocation2 + $0x10] sm:$0xff]
          %v1092 = vld [vmem:[#allocation2 + $0x18] sm:$0xff]
          %v1093 = vld [vmem:[#allocation2 + $0x20] sm:$0xff]
          %v1094 = vld [vmem:[#allocation2 + $0x28] sm:$0xff]
          %v1095 = vld [vmem:[#allocation2 + $0x30] sm:$0xff]
          %v1096 = vld [vmem:[#allocation2 + $0x38] sm:$0xff]
          %v1097 = vld [vmem:[#allocation2 + $0x40] sm:$0xff]
          %v1098 = vld [vmem:[#allocation2 + $0x48] sm:$0xff]
          %v1099 = vld [vmem:[#allocation2 + $0x50] sm:$0xff]
          %v1100 = vld [vmem:[#allocation2 + $0x58] sm:$0xff]
          %v1101 = vld [vmem:[#allocation2 + $0x60] sm:$0xff]
          %v1102 = vld [vmem:[#allocation2 + $0x68] sm:$0xff]
          %v1103 = vld [vmem:[#allocation2 + $0x70] sm:$0xff]
          %v1104 = vld [vmem:[#allocation2 + $0x78] sm:$0xff]
          %v1105 = vlaneseq
          %v1106 = vshrl.u32 %v1105, 7
          %v1107 = vsub.s32 0, %v1106
          %v1108 = vrot.slane %v1088, %v1107
          %v1109 = vadd.f32 %v1089, %v1108
          %v1110 = vadd.f32 %v1090, %v1108
          %v1111 = vadd.f32 %v1091, %v1108
          %v1112 = vadd.f32 %v1092, %v1108
          %v1113 = vadd.f32 %v1093, %v1108
          %v1114 = vadd.f32 %v1094, %v1108
          %v1115 = vadd.f32 %v1095, %v1108
          %v1116 = vadd.f32 %v1096, %v1108
          %v1117 = vadd.f32 %v1097, %v1108
          %v1118 = vadd.f32 %v1098, %v1108
          %v1119 = vadd.f32 %v1099, %v1108
          %v1120 = vadd.f32 %v1100, %v1108
          %v1121 = vadd.f32 %v1101, %v1108
          %v1122 = vadd.f32 %v1102, %v1108
          %v1123 = vadd.f32 %v1103, %v1108
          %v1124 = vadd.f32 %v1104, %v1108
          %vm1125 = vcmp.gt.f32.partialorder %v1109, 0.0
          %vm1126 = vcmp.gt.f32.partialorder %v1110, 0.0
          %vm1127 = vcmp.gt.f32.partialorder %v1111, 0.0
          %vm1128 = vcmp.gt.f32.partialorder %v1112, 0.0
          %vm1129 = vcmp.gt.f32.partialorder %v1113, 0.0
          %vm1130 = vcmp.gt.f32.partialorder %v1114, 0.0
          %vm1131 = vcmp.gt.f32.partialorder %v1115, 0.0
          %vm1132 = vcmp.gt.f32.partialorder %v1116, 0.0
          %vm1133 = vcmp.gt.f32.partialorder %v1117, 0.0
          %vm1134 = vcmp.gt.f32.partialorder %v1118, 0.0
          %vm1135 = vcmp.gt.f32.partialorder %v1119, 0.0
          %vm1136 = vcmp.gt.f32.partialorder %v1120, 0.0
          %vm1137 = vcmp.gt.f32.partialorder %v1121, 0.0
          %vm1138 = vcmp.gt.f32.partialorder %v1122, 0.0
          %vm1139 = vcmp.gt.f32.partialorder %v1123, 0.0
          %vm1140 = vcmp.gt.f32.partialorder %v1124, 0.0
          %v1141 = vmul.f32 %v1109, 0.01
          %v1142 = vmul.f32 %v1110, 0.01
          %v1143 = vmul.f32 %v1111, 0.01
          %v1144 = vmul.f32 %v1112, 0.01
          %v1145 = vmul.f32 %v1113, 0.01
          %v1146 = vmul.f32 %v1114, 0.01
          %v1147 = vmul.f32 %v1115, 0.01
          %v1148 = vmul.f32 %v1116, 0.01
          %v1149 = vmul.f32 %v1117, 0.01
          %v1150 = vmul.f32 %v1118, 0.01
          %v1151 = vmul.f32 %v1119, 0.01
          %v1152 = vmul.f32 %v1120, 0.01
          %v1153 = vmul.f32 %v1121, 0.01
          %v1154 = vmul.f32 %v1122, 0.01
          %v1155 = vmul.f32 %v1123, 0.01
          %v1156 = vmul.f32 %v1124, 0.01
          %v1157 = vsel %vm1125, %v1109, %v1141
          %v1158 = vsel %vm1126, %v1110, %v1142
          %v1159 = vsel %vm1127, %v1111, %v1143
          %v1160 = vsel %vm1128, %v1112, %v1144
          %v1161 = vsel %vm1129, %v1113, %v1145
          %v1162 = vsel %vm1130, %v1114, %v1146
          %v1163 = vsel %vm1131, %v1115, %v1147
          %v1164 = vsel %vm1132, %v1116, %v1148
          %v1165 = vsel %vm1133, %v1117, %v1149
          %v1166 = vsel %vm1134, %v1118, %v1150
          %v1167 = vsel %vm1135, %v1119, %v1151
          %v1168 = vsel %vm1136, %v1120, %v1152
          %v1169 = vsel %vm1137, %v1121, %v1153
          %v1170 = vsel %vm1138, %v1122, %v1154
          %v1171 = vsel %vm1139, %v1123, %v1155
          %v1172 = vsel %vm1140, %v1124, %v1156
          %v1173 = vld [vmem:[%s4] sm:$0xff]
          %v1174 = vld [vmem:[%s4 + $0x8] sm:$0xff]
          %v1175 = vld [vmem:[%s4 + $0x10] sm:$0xff]
          %v1176 = vld [vmem:[%s4 + $0x18] sm:$0xff]
          %v1177 = vld [vmem:[%s4 + $0x20] sm:$0xff]
          %v1178 = vld [vmem:[%s4 + $0x28] sm:$0xff]
          %v1179 = vld [vmem:[%s4 + $0x30] sm:$0xff]
          %v1180 = vld [vmem:[%s4 + $0x38] sm:$0xff]
          %v1181 = vld [vmem:[%s4 + $0x40] sm:$0xff]
          %v1182 = vld [vmem:[%s4 + $0x48] sm:$0xff]
          %v1183 = vld [vmem:[%s4 + $0x50] sm:$0xff]
          %v1184 = vld [vmem:[%s4 + $0x58] sm:$0xff]
          %v1185 = vld [vmem:[%s4 + $0x60] sm:$0xff]
          %v1186 = vld [vmem:[%s4 + $0x68] sm:$0xff]
          %v1187 = vld [vmem:[%s4 + $0x70] sm:$0xff]
          %v1188 = vld [vmem:[%s4 + $0x78] sm:$0xff]
          %v1189 = vld [vmem:[%s5] sm:$0xf]
          %v1190 = vld [vmem:[%s5 + $0x4] sm:$0xf]
          %v1191 = vld [vmem:[%s5 + $0x8] sm:$0xf]
          %v1192 = vld [vmem:[%s5 + $0xc] sm:$0xf]
          %v1193 = vld [vmem:[%s5 + $0x10] sm:$0xf]
          %v1194 = vld [vmem:[%s5 + $0x14] sm:$0xf]
          %v1195 = vld [vmem:[%s5 + $0x18] sm:$0xf]
          %v1196 = vld [vmem:[%s5 + $0x1c] sm:$0xf]
          %v1197 = vld [vmem:[%s5 + $0x20] sm:$0xf]
          %v1198 = vld [vmem:[%s5 + $0x24] sm:$0xf]
          %v1199 = vld [vmem:[%s5 + $0x28] sm:$0xf]
          %v1200 = vld [vmem:[%s5 + $0x2c] sm:$0xf]
          %v1201 = vld [vmem:[%s5 + $0x30] sm:$0xf]
          %v1202 = vld [vmem:[%s5 + $0x34] sm:$0xf]
          %v1203 = vld [vmem:[%s5 + $0x38] sm:$0xf]
          %v1204 = vld [vmem:[%s5 + $0x3c] sm:$0xf]
          %v1205 = vpack.c.bf16 %v1174, %v1173
          %v1206 = vpack.c.bf16 %v1176, %v1175
          %v1207 = vpack.c.bf16 %v1178, %v1177
          %v1208 = vpack.c.bf16 %v1180, %v1179
          %v1209 = vpack.c.bf16 %v1182, %v1181
          %v1210 = vpack.c.bf16 %v1184, %v1183
          %v1211 = vpack.c.bf16 %v1186, %v1185
          %v1212 = vpack.c.bf16 %v1188, %v1187
          %v1213 = vlaneseq
          %v1214 = vshrl.u32 %v1213, 7
          %v1215 = vsub.s32 1, %v1214
          %v1216 = vrot.slane %v1088, %v1215
          %v1233 = vunpack.c.l.b16 %v1189
          %v1234 = vunpack.c.l.b16 %v1190
          %v1235 = vunpack.c.l.b16 %v1191
          %v1236 = vunpack.c.l.b16 %v1192
          %v1237 = vunpack.c.l.b16 %v1193
          %v1238 = vunpack.c.l.b16 %v1194
          %v1239 = vunpack.c.l.b16 %v1195
          %v1240 = vunpack.c.l.b16 %v1196
          %v1241 = vunpack.c.l.b16 %v1197
          %v1242 = vunpack.c.l.b16 %v1198
          %v1243 = vunpack.c.l.b16 %v1199
          %v1244 = vunpack.c.l.b16 %v1200
          %v1245 = vunpack.c.l.b16 %v1201
          %v1246 = vunpack.c.l.b16 %v1202
          %v1247 = vunpack.c.l.b16 %v1203
          %v1248 = vunpack.c.l.b16 %v1204
          %v1249 = vpack.c.b16 %v1234, %v1233
          %v1250 = vpack.c.b16 %v1236, %v1235
          %v1251 = vpack.c.b16 %v1238, %v1237
          %v1252 = vpack.c.b16 %v1240, %v1239
          %v1253 = vpack.c.b16 %v1242, %v1241
          %v1254 = vpack.c.b16 %v1244, %v1243
          %v1255 = vpack.c.b16 %v1246, %v1245
          %v1256 = vpack.c.b16 %v1248, %v1247
          %1265 = vmatprep.subr.bf16.mxu0 0
          %1266 = vmatpush1.bf16.msra.mxu0 %v1256
          %1267 = vmatprep.subr.bf16.mxu0 0
          %1268 = vmatpush1.bf16.msra.mxu0 %v1255
          %1269 = vmatprep.subr.bf16.mxu0 0
          %1270 = vmatpush1.bf16.msra.mxu0 %v1254
          %1271 = vmatprep.subr.bf16.mxu0 0
          %1272 = vmatpush1.bf16.msra.mxu0 %v1253
          %1273 = vmatprep.subr.bf16.mxu0 0
          %1274 = vmatpush1.bf16.msra.mxu0 %v1252
          %1275 = vmatprep.subr.bf16.mxu0 0
          %1276 = vmatpush1.bf16.msra.mxu0 %v1251
          %1277 = vmatprep.subr.bf16.mxu0 0
          %1278 = vmatpush1.bf16.msra.mxu0 %v1250
          %1279 = vmatprep.subr.bf16.mxu0 0
          %1280 = vmatpush1.bf16.msra.mxu0 %v1249
          %1281 = vmatprep.subr.bf16.mxu0 0
          %1282 = vmatpush2.bf16.msra.mxu0 0
          %1283 = vmatprep.subr.bf16.mxu0 0
          %1284 = vmatpush2.bf16.msra.mxu0 0
          %1285 = vmatprep.subr.bf16.mxu0 0
          %1286 = vmatpush2.bf16.msra.mxu0 0
          %1287 = vmatprep.subr.bf16.mxu0 0
          %1288 = vmatpush2.bf16.msra.mxu0 0
          %1289 = vmatprep.subr.bf16.mxu0 0
          %1290 = vmatpush2.bf16.msra.mxu0 0
          %1291 = vmatprep.subr.bf16.mxu0 0
          %1292 = vmatpush2.bf16.msra.mxu0 0
          %1293 = vmatprep.subr.bf16.mxu0 0
          %1294 = vmatpush2.bf16.msra.mxu0 0
          %1295 = vmatprep.subr.bf16.mxu0 0
          %1296 = vmatpush2.bf16.msra.mxu0 0
          %1297 = vmatprep.mubr.bf16.mxu0 0
          %1298 = vmatmul.mubr.bf16.gmra.mxu0 %v1205
          %v1299 = vpop.f32.mrf.mxu0
          %v1300 = vadd.f32 %v1216, %v1299
          %v1301 = vpop.f32.mrf.mxu0
          %v1302 = vpop.f32.mrf.mxu0
          %v1303 = vadd.f32 %v1216, %v1302
          %v1304 = vpop.f32.mrf.mxu0
          %1305 = vmatprep.mubr.bf16.mxu0 0
          %1306 = vmatmul.mubr.bf16.gmra.mxu0 %v1206
          %v1307 = vpop.f32.mrf.mxu0
          %v1308 = vadd.f32 %v1216, %v1307
          %v1309 = vpop.f32.mrf.mxu0
          %v1310 = vpop.f32.mrf.mxu0
          %v1311 = vadd.f32 %v1216, %v1310
          %v1312 = vpop.f32.mrf.mxu0
          %1313 = vmatprep.mubr.bf16.mxu0 0
          %1314 = vmatmul.mubr.bf16.gmra.mxu0 %v1207
          %v1315 = vpop.f32.mrf.mxu0
          %v1316 = vadd.f32 %v1216, %v1315
          %v1317 = vpop.f32.mrf.mxu0
          %v1318 = vpop.f32.mrf.mxu0
          %v1319 = vadd.f32 %v1216, %v1318
          %v1320 = vpop.f32.mrf.mxu0
          %1321 = vmatprep.mubr.bf16.mxu0 0
          %1322 = vmatmul.mubr.bf16.gmra.mxu0 %v1208
          %v1323 = vpop.f32.mrf.mxu0
          %v1324 = vadd.f32 %v1216, %v1323
          %v1325 = vpop.f32.mrf.mxu0
          %v1326 = vpop.f32.mrf.mxu0
          %v1327 = vadd.f32 %v1216, %v1326
          %v1328 = vpop.f32.mrf.mxu0
          %1329 = vmatprep.mubr.bf16.mxu0 0
          %1330 = vmatmul.mubr.bf16.gmra.mxu0 %v1209
          %v1331 = vpop.f32.mrf.mxu0
          %v1332 = vadd.f32 %v1216, %v1331
          %v1333 = vpop.f32.mrf.mxu0
          %v1334 = vpop.f32.mrf.mxu0
          %v1335 = vadd.f32 %v1216, %v1334
          %v1336 = vpop.f32.mrf.mxu0
          %1337 = vmatprep.mubr.bf16.mxu0 0
          %1338 = vmatmul.mubr.bf16.gmra.mxu0 %v1210
          %v1339 = vpop.f32.mrf.mxu0
          %v1340 = vadd.f32 %v1216, %v1339
          %v1341 = vpop.f32.mrf.mxu0
          %v1342 = vpop.f32.mrf.mxu0
          %v1343 = vadd.f32 %v1216, %v1342
          %v1344 = vpop.f32.mrf.mxu0
          %1345 = vmatprep.mubr.bf16.mxu0 0
          %1346 = vmatmul.mubr.bf16.gmra.mxu0 %v1211
          %v1347 = vpop.f32.mrf.mxu0
          %v1348 = vadd.f32 %v1216, %v1347
          %v1349 = vpop.f32.mrf.mxu0
          %v1350 = vpop.f32.mrf.mxu0
          %v1351 = vadd.f32 %v1216, %v1350
          %v1352 = vpop.f32.mrf.mxu0
          %1353 = vmatprep.mubr.bf16.mxu0 0
          %1354 = vmatmul.mubr.bf16.gmra.mxu0 %v1212
          %v1355 = vpop.f32.mrf.mxu0
          %v1356 = vadd.f32 %v1216, %v1355
          %v1357 = vpop.f32.mrf.mxu0
          %v1358 = vpop.f32.mrf.mxu0
          %v1359 = vadd.f32 %v1216, %v1358
          %v1360 = vpop.f32.mrf.mxu0
          %1361 = vdwg.mxu0
          %vm1362 = vcmp.gt.f32.partialorder %v1300, 0.0
          %vm1363 = vcmp.gt.f32.partialorder %v1303, 0.0
          %vm1364 = vcmp.gt.f32.partialorder %v1308, 0.0
          %vm1365 = vcmp.gt.f32.partialorder %v1311, 0.0
          %vm1366 = vcmp.gt.f32.partialorder %v1316, 0.0
          %vm1367 = vcmp.gt.f32.partialorder %v1319, 0.0
          %vm1368 = vcmp.gt.f32.partialorder %v1324, 0.0
          %vm1369 = vcmp.gt.f32.partialorder %v1327, 0.0
          %vm1370 = vcmp.gt.f32.partialorder %v1332, 0.0
          %vm1371 = vcmp.gt.f32.partialorder %v1335, 0.0
          %vm1372 = vcmp.gt.f32.partialorder %v1340, 0.0
          %vm1373 = vcmp.gt.f32.partialorder %v1343, 0.0
          %vm1374 = vcmp.gt.f32.partialorder %v1348, 0.0
          %vm1375 = vcmp.gt.f32.partialorder %v1351, 0.0
          %vm1376 = vcmp.gt.f32.partialorder %v1356, 0.0
          %vm1377 = vcmp.gt.f32.partialorder %v1359, 0.0
          %v1378 = vmul.f32 %v1300, 0.01
          %v1379 = vmul.f32 %v1303, 0.01
          %v1380 = vmul.f32 %v1308, 0.01
          %v1381 = vmul.f32 %v1311, 0.01
          %v1382 = vmul.f32 %v1316, 0.01
          %v1383 = vmul.f32 %v1319, 0.01
          %v1384 = vmul.f32 %v1324, 0.01
          %v1385 = vmul.f32 %v1327, 0.01
          %v1386 = vmul.f32 %v1332, 0.01
          %v1387 = vmul.f32 %v1335, 0.01
          %v1388 = vmul.f32 %v1340, 0.01
          %v1389 = vmul.f32 %v1343, 0.01
          %v1390 = vmul.f32 %v1348, 0.01
          %v1391 = vmul.f32 %v1351, 0.01
          %v1392 = vmul.f32 %v1356, 0.01
          %v1393 = vmul.f32 %v1359, 0.01
          %v1394 = vsel %vm1362, %v1300, %v1378
          %v1395 = vsel %vm1363, %v1303, %v1379
          %v1396 = vsel %vm1364, %v1308, %v1380
          %v1397 = vsel %vm1365, %v1311, %v1381
          %v1398 = vsel %vm1366, %v1316, %v1382
          %v1399 = vsel %vm1367, %v1319, %v1383
          %v1400 = vsel %vm1368, %v1324, %v1384
          %v1401 = vsel %vm1369, %v1327, %v1385
          %v1402 = vsel %vm1370, %v1332, %v1386
          %v1403 = vsel %vm1371, %v1335, %v1387
          %v1404 = vsel %vm1372, %v1340, %v1388
          %v1405 = vsel %vm1373, %v1343, %v1389
          %v1406 = vsel %vm1374, %v1348, %v1390
          %v1407 = vsel %vm1375, %v1351, %v1391
          %v1408 = vsel %vm1376, %v1356, %v1392
          %v1409 = vsel %vm1377, %v1359, %v1393
          %v1410 = vadd.f32 %v1157, %v1394
          %v1411 = vadd.f32 %v1158, %v1395
          %v1412 = vadd.f32 %v1159, %v1396
          %v1413 = vadd.f32 %v1160, %v1397
          %v1414 = vadd.f32 %v1161, %v1398
          %v1415 = vadd.f32 %v1162, %v1399
          %v1416 = vadd.f32 %v1163, %v1400
          %v1417 = vadd.f32 %v1164, %v1401
          %v1418 = vadd.f32 %v1165, %v1402
          %v1419 = vadd.f32 %v1166, %v1403
          %v1420 = vadd.f32 %v1167, %v1404
          %v1421 = vadd.f32 %v1168, %v1405
          %v1422 = vadd.f32 %v1169, %v1406
          %v1423 = vadd.f32 %v1170, %v1407
          %v1424 = vadd.f32 %v1171, %v1408
          %v1425 = vadd.f32 %v1172, %v1409
          %v1426 = vld [vmem:[#allocation8] sm:$0xf]
          %v1427 = vld [vmem:[#allocation8 + $0x4] sm:$0xf]
          %v1428 = vld [vmem:[#allocation8 + $0x8] sm:$0xf]
          %v1429 = vld [vmem:[#allocation8 + $0xc] sm:$0xf]
          %v1430 = vld [vmem:[#allocation8 + $0x10] sm:$0xf]
          %v1431 = vld [vmem:[#allocation8 + $0x14] sm:$0xf]
          %v1432 = vld [vmem:[#allocation8 + $0x18] sm:$0xf]
          %v1433 = vld [vmem:[#allocation8 + $0x1c] sm:$0xf]
          %v1434 = vld [vmem:[#allocation8 + $0x20] sm:$0xf]
          %v1435 = vld [vmem:[#allocation8 + $0x24] sm:$0xf]
          %v1436 = vld [vmem:[#allocation8 + $0x28] sm:$0xf]
          %v1437 = vld [vmem:[#allocation8 + $0x2c] sm:$0xf]
          %v1438 = vld [vmem:[#allocation8 + $0x30] sm:$0xf]
          %v1439 = vld [vmem:[#allocation8 + $0x34] sm:$0xf]
          %v1440 = vld [vmem:[#allocation8 + $0x38] sm:$0xf]
          %v1441 = vld [vmem:[#allocation8 + $0x3c] sm:$0xf]
          %v1442 = vpack.c.bf16 %v1411, %v1410
          %v1443 = vpack.c.bf16 %v1413, %v1412
          %v1444 = vpack.c.bf16 %v1415, %v1414
          %v1445 = vpack.c.bf16 %v1417, %v1416
          %v1446 = vpack.c.bf16 %v1419, %v1418
          %v1447 = vpack.c.bf16 %v1421, %v1420
          %v1448 = vpack.c.bf16 %v1423, %v1422
          %v1449 = vpack.c.bf16 %v1425, %v1424
          %v1450 = vlaneseq
          %v1451 = vshrl.u32 %v1450, 7
          %v1452 = vsub.s32 2, %v1451
          %v1453 = vrot.slane %v1088, %v1452
          %v1470 = vunpack.c.l.b16 %v1426
          %v1471 = vunpack.c.l.b16 %v1427
          %v1472 = vunpack.c.l.b16 %v1428
          %v1473 = vunpack.c.l.b16 %v1429
          %v1474 = vunpack.c.l.b16 %v1430
          %v1475 = vunpack.c.l.b16 %v1431
          %v1476 = vunpack.c.l.b16 %v1432
          %v1477 = vunpack.c.l.b16 %v1433
          %v1478 = vunpack.c.l.b16 %v1434
          %v1479 = vunpack.c.l.b16 %v1435
          %v1480 = vunpack.c.l.b16 %v1436
          %v1481 = vunpack.c.l.b16 %v1437
          %v1482 = vunpack.c.l.b16 %v1438
          %v1483 = vunpack.c.l.b16 %v1439
          %v1484 = vunpack.c.l.b16 %v1440
          %v1485 = vunpack.c.l.b16 %v1441
          %v1486 = vpack.c.b16 %v1471, %v1470
          %v1487 = vpack.c.b16 %v1473, %v1472
          %v1488 = vpack.c.b16 %v1475, %v1474
          %v1489 = vpack.c.b16 %v1477, %v1476
          %v1490 = vpack.c.b16 %v1479, %v1478
          %v1491 = vpack.c.b16 %v1481, %v1480
          %v1492 = vpack.c.b16 %v1483, %v1482
          %v1493 = vpack.c.b16 %v1485, %v1484
          %1502 = vmatprep.subr.bf16.mxu0 0
          %1503 = vmatpush1.bf16.msra.mxu0 %v1493
          %1504 = vmatprep.subr.bf16.mxu0 0
          %1505 = vmatpush1.bf16.msra.mxu0 %v1492
          %1506 = vmatprep.subr.bf16.mxu0 0
          %1507 = vmatpush1.bf16.msra.mxu0 %v1491
          %1508 = vmatprep.subr.bf16.mxu0 0
          %1509 = vmatpush1.bf16.msra.mxu0 %v1490
          %1510 = vmatprep.subr.bf16.mxu0 0
          %1511 = vmatpush1.bf16.msra.mxu0 %v1489
          %1512 = vmatprep.subr.bf16.mxu0 0
          %1513 = vmatpush1.bf16.msra.mxu0 %v1488
          %1514 = vmatprep.subr.bf16.mxu0 0
          %1515 = vmatpush1.bf16.msra.mxu0 %v1487
          %1516 = vmatprep.subr.bf16.mxu0 0
          %1517 = vmatpush1.bf16.msra.mxu0 %v1486
          %1518 = vmatprep.subr.bf16.mxu0 0
          %1519 = vmatpush2.bf16.msra.mxu0 0
          %1520 = vmatprep.subr.bf16.mxu0 0
          %1521 = vmatpush2.bf16.msra.mxu0 0
          %1522 = vmatprep.subr.bf16.mxu0 0
          %1523 = vmatpush2.bf16.msra.mxu0 0
          %1524 = vmatprep.subr.bf16.mxu0 0
          %1525 = vmatpush2.bf16.msra.mxu0 0
          %1526 = vmatprep.subr.bf16.mxu0 0
          %1527 = vmatpush2.bf16.msra.mxu0 0
          %1528 = vmatprep.subr.bf16.mxu0 0
          %1529 = vmatpush2.bf16.msra.mxu0 0
          %1530 = vmatprep.subr.bf16.mxu0 0
          %1531 = vmatpush2.bf16.msra.mxu0 0
          %1532 = vmatprep.subr.bf16.mxu0 0
          %1533 = vmatpush2.bf16.msra.mxu0 0
          %1534 = vmatprep.mubr.bf16.mxu0 0
          %1535 = vmatmul.mubr.bf16.gmra.mxu0 %v1442
          %v1536 = vpop.f32.mrf.mxu0
          %v1537 = vadd.f32 %v1453, %v1536
          %v1538 = vpop.f32.mrf.mxu0
          %v1539 = vpop.f32.mrf.mxu0
          %v1540 = vadd.f32 %v1453, %v1539
          %v1541 = vpop.f32.mrf.mxu0
          %1542 = vmatprep.mubr.bf16.mxu0 0
          %1543 = vmatmul.mubr.bf16.gmra.mxu0 %v1443
          %v1544 = vpop.f32.mrf.mxu0
          %v1545 = vadd.f32 %v1453, %v1544
          %v1546 = vpop.f32.mrf.mxu0
          %v1547 = vpop.f32.mrf.mxu0
          %v1548 = vadd.f32 %v1453, %v1547
          %v1549 = vpop.f32.mrf.mxu0
          %1550 = vmatprep.mubr.bf16.mxu0 0
          %1551 = vmatmul.mubr.bf16.gmra.mxu0 %v1444
          %v1552 = vpop.f32.mrf.mxu0
          %v1553 = vadd.f32 %v1453, %v1552
          %v1554 = vpop.f32.mrf.mxu0
          %v1555 = vpop.f32.mrf.mxu0
          %v1556 = vadd.f32 %v1453, %v1555
          %v1557 = vpop.f32.mrf.mxu0
          %1558 = vmatprep.mubr.bf16.mxu0 0
          %1559 = vmatmul.mubr.bf16.gmra.mxu0 %v1445
          %v1560 = vpop.f32.mrf.mxu0
          %v1561 = vadd.f32 %v1453, %v1560
          %v1562 = vpop.f32.mrf.mxu0
          %v1563 = vpop.f32.mrf.mxu0
          %v1564 = vadd.f32 %v1453, %v1563
          %v1565 = vpop.f32.mrf.mxu0
          %1566 = vmatprep.mubr.bf16.mxu0 0
          %1567 = vmatmul.mubr.bf16.gmra.mxu0 %v1446
          %v1568 = vpop.f32.mrf.mxu0
          %v1569 = vadd.f32 %v1453, %v1568
          %v1570 = vpop.f32.mrf.mxu0
          %v1571 = vpop.f32.mrf.mxu0
          %v1572 = vadd.f32 %v1453, %v1571
          %v1573 = vpop.f32.mrf.mxu0
          %1574 = vmatprep.mubr.bf16.mxu0 0
          %1575 = vmatmul.mubr.bf16.gmra.mxu0 %v1447
          %v1576 = vpop.f32.mrf.mxu0
          %v1577 = vadd.f32 %v1453, %v1576
          %v1578 = vpop.f32.mrf.mxu0
          %v1579 = vpop.f32.mrf.mxu0
          %v1580 = vadd.f32 %v1453, %v1579
          %v1581 = vpop.f32.mrf.mxu0
          %1582 = vmatprep.mubr.bf16.mxu0 0
          %1583 = vmatmul.mubr.bf16.gmra.mxu0 %v1448
          %v1584 = vpop.f32.mrf.mxu0
          %v1585 = vadd.f32 %v1453, %v1584
          %v1586 = vpop.f32.mrf.mxu0
          %v1587 = vpop.f32.mrf.mxu0
          %v1588 = vadd.f32 %v1453, %v1587
          %v1589 = vpop.f32.mrf.mxu0
          %1590 = vmatprep.mubr.bf16.mxu0 0
          %1591 = vmatmul.mubr.bf16.gmra.mxu0 %v1449
          %v1592 = vpop.f32.mrf.mxu0
          %v1593 = vadd.f32 %v1453, %v1592
          %v1594 = vpop.f32.mrf.mxu0
          %v1595 = vpop.f32.mrf.mxu0
          %v1596 = vadd.f32 %v1453, %v1595
          %v1597 = vpop.f32.mrf.mxu0
          %1598 = vdwg.mxu0
          %vm1599 = vcmp.gt.f32.partialorder %v1537, 0.0
          %vm1600 = vcmp.gt.f32.partialorder %v1540, 0.0
          %vm1601 = vcmp.gt.f32.partialorder %v1545, 0.0
          %vm1602 = vcmp.gt.f32.partialorder %v1548, 0.0
          %vm1603 = vcmp.gt.f32.partialorder %v1553, 0.0
          %vm1604 = vcmp.gt.f32.partialorder %v1556, 0.0
          %vm1605 = vcmp.gt.f32.partialorder %v1561, 0.0
          %vm1606 = vcmp.gt.f32.partialorder %v1564, 0.0
          %vm1607 = vcmp.gt.f32.partialorder %v1569, 0.0
          %vm1608 = vcmp.gt.f32.partialorder %v1572, 0.0
          %vm1609 = vcmp.gt.f32.partialorder %v1577, 0.0
          %vm1610 = vcmp.gt.f32.partialorder %v1580, 0.0
          %vm1611 = vcmp.gt.f32.partialorder %v1585, 0.0
          %vm1612 = vcmp.gt.f32.partialorder %v1588, 0.0
          %vm1613 = vcmp.gt.f32.partialorder %v1593, 0.0
          %vm1614 = vcmp.gt.f32.partialorder %v1596, 0.0
          %v1615 = vmul.f32 %v1537, 0.01
          %v1616 = vmul.f32 %v1540, 0.01
          %v1617 = vmul.f32 %v1545, 0.01
          %v1618 = vmul.f32 %v1548, 0.01
          %v1619 = vmul.f32 %v1553, 0.01
          %v1620 = vmul.f32 %v1556, 0.01
          %v1621 = vmul.f32 %v1561, 0.01
          %v1622 = vmul.f32 %v1564, 0.01
          %v1623 = vmul.f32 %v1569, 0.01
          %v1624 = vmul.f32 %v1572, 0.01
          %v1625 = vmul.f32 %v1577, 0.01
          %v1626 = vmul.f32 %v1580, 0.01
          %v1627 = vmul.f32 %v1585, 0.01
          %v1628 = vmul.f32 %v1588, 0.01
          %v1629 = vmul.f32 %v1593, 0.01
          %v1630 = vmul.f32 %v1596, 0.01
          %v1631 = vsel %vm1599, %v1537, %v1615
          %v1632 = vsel %vm1600, %v1540, %v1616
          %v1633 = vsel %vm1601, %v1545, %v1617
          %v1634 = vsel %vm1602, %v1548, %v1618
          %v1635 = vsel %vm1603, %v1553, %v1619
          %v1636 = vsel %vm1604, %v1556, %v1620
          %v1637 = vsel %vm1605, %v1561, %v1621
          %v1638 = vsel %vm1606, %v1564, %v1622
          %v1639 = vsel %vm1607, %v1569, %v1623
          %v1640 = vsel %vm1608, %v1572, %v1624
          %v1641 = vsel %vm1609, %v1577, %v1625
          %v1642 = vsel %vm1610, %v1580, %v1626
          %v1643 = vsel %vm1611, %v1585, %v1627
          %v1644 = vsel %vm1612, %v1588, %v1628
          %v1645 = vsel %vm1613, %v1593, %v1629
          %v1646 = vsel %vm1614, %v1596, %v1630
          %v1647 = vld [vmem:[#allocation10] sm:$0xf]
          %v1648 = vld [vmem:[#allocation10 + $0x4] sm:$0xf]
          %v1649 = vld [vmem:[#allocation10 + $0x8] sm:$0xf]
          %v1650 = vld [vmem:[#allocation10 + $0xc] sm:$0xf]
          %v1651 = vld [vmem:[#allocation10 + $0x10] sm:$0xf]
          %v1652 = vld [vmem:[#allocation10 + $0x14] sm:$0xf]
          %v1653 = vld [vmem:[#allocation10 + $0x18] sm:$0xf]
          %v1654 = vld [vmem:[#allocation10 + $0x1c] sm:$0xf]
          %v1655 = vld [vmem:[#allocation10 + $0x20] sm:$0xf]
          %v1656 = vld [vmem:[#allocation10 + $0x24] sm:$0xf]
          %v1657 = vld [vmem:[#allocation10 + $0x28] sm:$0xf]
          %v1658 = vld [vmem:[#allocation10 + $0x2c] sm:$0xf]
          %v1659 = vld [vmem:[#allocation10 + $0x30] sm:$0xf]
          %v1660 = vld [vmem:[#allocation10 + $0x34] sm:$0xf]
          %v1661 = vld [vmem:[#allocation10 + $0x38] sm:$0xf]
          %v1662 = vld [vmem:[#allocation10 + $0x3c] sm:$0xf]
          %v1663 = vld [vmem:[#allocation8 + $0x40] sm:$0xf]
          %v1664 = vld [vmem:[#allocation8 + $0x44] sm:$0xf]
          %v1665 = vld [vmem:[#allocation8 + $0x48] sm:$0xf]
          %v1666 = vld [vmem:[#allocation8 + $0x4c] sm:$0xf]
          %v1667 = vld [vmem:[#allocation8 + $0x50] sm:$0xf]
          %v1668 = vld [vmem:[#allocation8 + $0x54] sm:$0xf]
          %v1669 = vld [vmem:[#allocation8 + $0x58] sm:$0xf]
          %v1670 = vld [vmem:[#allocation8 + $0x5c] sm:$0xf]
          %v1671 = vld [vmem:[#allocation8 + $0x60] sm:$0xf]
          %v1672 = vld [vmem:[#allocation8 + $0x64] sm:$0xf]
          %v1673 = vld [vmem:[#allocation8 + $0x68] sm:$0xf]
          %v1674 = vld [vmem:[#allocation8 + $0x6c] sm:$0xf]
          %v1675 = vld [vmem:[#allocation8 + $0x70] sm:$0xf]
          %v1676 = vld [vmem:[#allocation8 + $0x74] sm:$0xf]
          %v1677 = vld [vmem:[#allocation8 + $0x78] sm:$0xf]
          %v1678 = vld [vmem:[#allocation8 + $0x7c] sm:$0xf]
          %v1679 = vpack.c.bf16 %v1632, %v1631
          %v1680 = vpack.c.bf16 %v1634, %v1633
          %v1681 = vpack.c.bf16 %v1636, %v1635
          %v1682 = vpack.c.bf16 %v1638, %v1637
          %v1683 = vpack.c.bf16 %v1640, %v1639
          %v1684 = vpack.c.bf16 %v1642, %v1641
          %v1685 = vpack.c.bf16 %v1644, %v1643
          %v1686 = vpack.c.bf16 %v1646, %v1645
          %v1703 = vunpack.c.l.b16 %v1663
          %v1704 = vunpack.c.l.b16 %v1664
          %v1705 = vunpack.c.l.b16 %v1665
          %v1706 = vunpack.c.l.b16 %v1666
          %v1707 = vunpack.c.l.b16 %v1667
          %v1708 = vunpack.c.l.b16 %v1668
          %v1709 = vunpack.c.l.b16 %v1669
          %v1710 = vunpack.c.l.b16 %v1670
          %v1711 = vunpack.c.l.b16 %v1671
          %v1712 = vunpack.c.l.b16 %v1672
          %v1713 = vunpack.c.l.b16 %v1673
          %v1714 = vunpack.c.l.b16 %v1674
          %v1715 = vunpack.c.l.b16 %v1675
          %v1716 = vunpack.c.l.b16 %v1676
          %v1717 = vunpack.c.l.b16 %v1677
          %v1718 = vunpack.c.l.b16 %v1678
          %v1719 = vpack.c.b16 %v1704, %v1703
          %v1720 = vpack.c.b16 %v1706, %v1705
          %v1721 = vpack.c.b16 %v1708, %v1707
          %v1722 = vpack.c.b16 %v1710, %v1709
          %v1723 = vpack.c.b16 %v1712, %v1711
          %v1724 = vpack.c.b16 %v1714, %v1713
          %v1725 = vpack.c.b16 %v1716, %v1715
          %v1726 = vpack.c.b16 %v1718, %v1717
          %1735 = vmatprep.subr.bf16.mxu0 0
          %1736 = vmatpush1.bf16.msra.mxu0 %v1726
          %1737 = vmatprep.subr.bf16.mxu0 0
          %1738 = vmatpush1.bf16.msra.mxu0 %v1725
          %1739 = vmatprep.subr.bf16.mxu0 0
          %1740 = vmatpush1.bf16.msra.mxu0 %v1724
          %1741 = vmatprep.subr.bf16.mxu0 0
          %1742 = vmatpush1.bf16.msra.mxu0 %v1723
          %1743 = vmatprep.subr.bf16.mxu0 0
          %1744 = vmatpush1.bf16.msra.mxu0 %v1722
          %1745 = vmatprep.subr.bf16.mxu0 0
          %1746 = vmatpush1.bf16.msra.mxu0 %v1721
          %1747 = vmatprep.subr.bf16.mxu0 0
          %1748 = vmatpush1.bf16.msra.mxu0 %v1720
          %1749 = vmatprep.subr.bf16.mxu0 0
          %1750 = vmatpush1.bf16.msra.mxu0 %v1719
          %1751 = vmatprep.subr.bf16.mxu0 0
          %1752 = vmatpush2.bf16.msra.mxu0 0
          %1753 = vmatprep.subr.bf16.mxu0 0
          %1754 = vmatpush2.bf16.msra.mxu0 0
          %1755 = vmatprep.subr.bf16.mxu0 0
          %1756 = vmatpush2.bf16.msra.mxu0 0
          %1757 = vmatprep.subr.bf16.mxu0 0
          %1758 = vmatpush2.bf16.msra.mxu0 0
          %1759 = vmatprep.subr.bf16.mxu0 0
          %1760 = vmatpush2.bf16.msra.mxu0 0
          %1761 = vmatprep.subr.bf16.mxu0 0
          %1762 = vmatpush2.bf16.msra.mxu0 0
          %1763 = vmatprep.subr.bf16.mxu0 0
          %1764 = vmatpush2.bf16.msra.mxu0 0
          %1765 = vmatprep.subr.bf16.mxu0 0
          %1766 = vmatpush2.bf16.msra.mxu0 0
          %1767 = vmatprep.mubr.bf16.mxu0 0
          %1768 = vmatmul.mubr.bf16.gmra.mxu0 %v1679
          %v1769 = vpop.f32.mrf.mxu0
          %v1770 = vadd.f32 0.0, %v1769
          %v1771 = vpop.f32.mrf.mxu0
          %v1772 = vpop.f32.mrf.mxu0
          %v1773 = vadd.f32 0.0, %v1772
          %v1774 = vpop.f32.mrf.mxu0
          %1775 = vmatprep.mubr.bf16.mxu0 0
          %1776 = vmatmul.mubr.bf16.gmra.mxu0 %v1680
          %v1777 = vpop.f32.mrf.mxu0
          %v1778 = vadd.f32 0.0, %v1777
          %v1779 = vpop.f32.mrf.mxu0
          %v1780 = vpop.f32.mrf.mxu0
          %v1781 = vadd.f32 0.0, %v1780
          %v1782 = vpop.f32.mrf.mxu0
          %1783 = vmatprep.mubr.bf16.mxu0 0
          %1784 = vmatmul.mubr.bf16.gmra.mxu0 %v1681
          %v1785 = vpop.f32.mrf.mxu0
          %v1786 = vadd.f32 0.0, %v1785
          %v1787 = vpop.f32.mrf.mxu0
          %v1788 = vpop.f32.mrf.mxu0
          %v1789 = vadd.f32 0.0, %v1788
          %v1790 = vpop.f32.mrf.mxu0
          %1791 = vmatprep.mubr.bf16.mxu0 0
          %1792 = vmatmul.mubr.bf16.gmra.mxu0 %v1682
          %v1793 = vpop.f32.mrf.mxu0
          %v1794 = vadd.f32 0.0, %v1793
          %v1795 = vpop.f32.mrf.mxu0
          %v1796 = vpop.f32.mrf.mxu0
          %v1797 = vadd.f32 0.0, %v1796
          %v1798 = vpop.f32.mrf.mxu0
          %1799 = vmatprep.mubr.bf16.mxu0 0
          %1800 = vmatmul.mubr.bf16.gmra.mxu0 %v1683
          %v1801 = vpop.f32.mrf.mxu0
          %v1802 = vadd.f32 0.0, %v1801
          %v1803 = vpop.f32.mrf.mxu0
          %v1804 = vpop.f32.mrf.mxu0
          %v1805 = vadd.f32 0.0, %v1804
          %v1806 = vpop.f32.mrf.mxu0
          %1807 = vmatprep.mubr.bf16.mxu0 0
          %1808 = vmatmul.mubr.bf16.gmra.mxu0 %v1684
          %v1809 = vpop.f32.mrf.mxu0
          %v1810 = vadd.f32 0.0, %v1809
          %v1811 = vpop.f32.mrf.mxu0
          %v1812 = vpop.f32.mrf.mxu0
          %v1813 = vadd.f32 0.0, %v1812
          %v1814 = vpop.f32.mrf.mxu0
          %1815 = vmatprep.mubr.bf16.mxu0 0
          %1816 = vmatmul.mubr.bf16.gmra.mxu0 %v1685
          %v1817 = vpop.f32.mrf.mxu0
          %v1818 = vadd.f32 0.0, %v1817
          %v1819 = vpop.f32.mrf.mxu0
          %v1820 = vpop.f32.mrf.mxu0
          %v1821 = vadd.f32 0.0, %v1820
          %v1822 = vpop.f32.mrf.mxu0
          %1823 = vmatprep.mubr.bf16.mxu0 0
          %1824 = vmatmul.mubr.bf16.gmra.mxu0 %v1686
          %v1825 = vpop.f32.mrf.mxu0
          %v1826 = vadd.f32 0.0, %v1825
          %v1827 = vpop.f32.mrf.mxu0
          %v1828 = vpop.f32.mrf.mxu0
          %v1829 = vadd.f32 0.0, %v1828
          %v1830 = vpop.f32.mrf.mxu0
          %1831 = vdwg.mxu0
          %v1832 = vpack.c.bf16 %v1773, %v1770
          %v1833 = vpack.c.bf16 %v1781, %v1778
          %v1834 = vpack.c.bf16 %v1789, %v1786
          %v1835 = vpack.c.bf16 %v1797, %v1794
          %v1836 = vpack.c.bf16 %v1805, %v1802
          %v1837 = vpack.c.bf16 %v1813, %v1810
          %v1838 = vpack.c.bf16 %v1821, %v1818
          %v1839 = vpack.c.bf16 %v1829, %v1826
          %v1840 = vlaneseq
          %v1841 = vshrl.u32 %v1840, 7
          %v1842 = vsub.s32 3, %v1841
          %v1843 = vrot.slane %v1088, %v1842
          %v1860 = vunpack.c.l.b16 %v1647
          %v1861 = vunpack.c.l.b16 %v1648
          %v1862 = vunpack.c.l.b16 %v1649
          %v1863 = vunpack.c.l.b16 %v1650
          %v1864 = vunpack.c.l.b16 %v1651
          %v1865 = vunpack.c.l.b16 %v1652
          %v1866 = vunpack.c.l.b16 %v1653
          %v1867 = vunpack.c.l.b16 %v1654
          %v1868 = vunpack.c.l.b16 %v1655
          %v1869 = vunpack.c.l.b16 %v1656
          %v1870 = vunpack.c.l.b16 %v1657
          %v1871 = vunpack.c.l.b16 %v1658
          %v1872 = vunpack.c.l.b16 %v1659
          %v1873 = vunpack.c.l.b16 %v1660
          %v1874 = vunpack.c.l.b16 %v1661
          %v1875 = vunpack.c.l.b16 %v1662
          %v1876 = vpack.c.b16 %v1861, %v1860
          %v1877 = vpack.c.b16 %v1863, %v1862
          %v1878 = vpack.c.b16 %v1865, %v1864
          %v1879 = vpack.c.b16 %v1867, %v1866
          %v1880 = vpack.c.b16 %v1869, %v1868
          %v1881 = vpack.c.b16 %v1871, %v1870
          %v1882 = vpack.c.b16 %v1873, %v1872
          %v1883 = vpack.c.b16 %v1875, %v1874
          %1892 = vmatprep.subr.bf16.mxu0 0
          %1893 = vmatpush1.bf16.msra.mxu0 %v1839
          %1894 = vmatprep.subr.bf16.mxu0 0
          %1895 = vmatpush1.bf16.msra.mxu0 %v1838
          %1896 = vmatprep.subr.bf16.mxu0 0
          %1897 = vmatpush1.bf16.msra.mxu0 %v1837
          %1898 = vmatprep.subr.bf16.mxu0 0
          %1899 = vmatpush1.bf16.msra.mxu0 %v1836
          %1900 = vmatprep.subr.bf16.mxu0 0
          %1901 = vmatpush1.bf16.msra.mxu0 %v1835
          %1902 = vmatprep.subr.bf16.mxu0 0
          %1903 = vmatpush1.bf16.msra.mxu0 %v1834
          %1904 = vmatprep.subr.bf16.mxu0 0
          %1905 = vmatpush1.bf16.msra.mxu0 %v1833
          %1906 = vmatprep.subr.bf16.mxu0 0
          %1907 = vmatpush1.bf16.msra.mxu0 %v1832
          %1908 = vmatprep.subr.bf16.mxu0 0
          %1909 = vmatpush2.bf16.msra.mxu0 0
          %1910 = vmatprep.subr.bf16.mxu0 0
          %1911 = vmatpush2.bf16.msra.mxu0 0
          %1912 = vmatprep.subr.bf16.mxu0 0
          %1913 = vmatpush2.bf16.msra.mxu0 0
          %1914 = vmatprep.subr.bf16.mxu0 0
          %1915 = vmatpush2.bf16.msra.mxu0 0
          %1916 = vmatprep.subr.bf16.mxu0 0
          %1917 = vmatpush2.bf16.msra.mxu0 0
          %1918 = vmatprep.subr.bf16.mxu0 0
          %1919 = vmatpush2.bf16.msra.mxu0 0
          %1920 = vmatprep.subr.bf16.mxu0 0
          %1921 = vmatpush2.bf16.msra.mxu0 0
          %1922 = vmatprep.subr.bf16.mxu0 0
          %1923 = vmatpush2.bf16.msra.mxu0 0
          %1924 = vmatprep.mubr.bf16.mxu0 0
          %1925 = vmatmul.mubr.bf16.gmra.mxu0 %v1876
          %v1926 = vpop.f32.mrf.mxu0
          %v1927 = vadd.f32 %v1843, %v1926
          %v1928 = vpop.f32.mrf.mxu0
          %v1929 = vpop.f32.mrf.mxu0
          %v1930 = vadd.f32 %v1843, %v1929
          %v1931 = vpop.f32.mrf.mxu0
          %1932 = vmatprep.mubr.bf16.mxu0 0
          %1933 = vmatmul.mubr.bf16.gmra.mxu0 %v1877
          %v1934 = vpop.f32.mrf.mxu0
          %v1935 = vadd.f32 %v1843, %v1934
          %v1936 = vpop.f32.mrf.mxu0
          %v1937 = vpop.f32.mrf.mxu0
          %v1938 = vadd.f32 %v1843, %v1937
          %v1939 = vpop.f32.mrf.mxu0
          %1940 = vmatprep.mubr.bf16.mxu0 0
          %1941 = vmatmul.mubr.bf16.gmra.mxu0 %v1878
          %v1942 = vpop.f32.mrf.mxu0
          %v1943 = vadd.f32 %v1843, %v1942
          %v1944 = vpop.f32.mrf.mxu0
          %v1945 = vpop.f32.mrf.mxu0
          %v1946 = vadd.f32 %v1843, %v1945
          %v1947 = vpop.f32.mrf.mxu0
          %1948 = vmatprep.mubr.bf16.mxu0 0
          %1949 = vmatmul.mubr.bf16.gmra.mxu0 %v1879
          %v1950 = vpop.f32.mrf.mxu0
          %v1951 = vadd.f32 %v1843, %v1950
          %v1952 = vpop.f32.mrf.mxu0
          %v1953 = vpop.f32.mrf.mxu0
          %v1954 = vadd.f32 %v1843, %v1953
          %v1955 = vpop.f32.mrf.mxu0
          %1956 = vmatprep.mubr.bf16.mxu0 0
          %1957 = vmatmul.mubr.bf16.gmra.mxu0 %v1880
          %v1958 = vpop.f32.mrf.mxu0
          %v1959 = vadd.f32 %v1843, %v1958
          %v1960 = vpop.f32.mrf.mxu0
          %v1961 = vpop.f32.mrf.mxu0
          %v1962 = vadd.f32 %v1843, %v1961
          %v1963 = vpop.f32.mrf.mxu0
          %1964 = vmatprep.mubr.bf16.mxu0 0
          %1965 = vmatmul.mubr.bf16.gmra.mxu0 %v1881
          %v1966 = vpop.f32.mrf.mxu0
          %v1967 = vadd.f32 %v1843, %v1966
          %v1968 = vpop.f32.mrf.mxu0
          %v1969 = vpop.f32.mrf.mxu0
          %v1970 = vadd.f32 %v1843, %v1969
          %v1971 = vpop.f32.mrf.mxu0
          %1972 = vmatprep.mubr.bf16.mxu0 0
          %1973 = vmatmul.mubr.bf16.gmra.mxu0 %v1882
          %v1974 = vpop.f32.mrf.mxu0
          %v1975 = vadd.f32 %v1843, %v1974
          %v1976 = vpop.f32.mrf.mxu0
          %v1977 = vpop.f32.mrf.mxu0
          %v1978 = vadd.f32 %v1843, %v1977
          %v1979 = vpop.f32.mrf.mxu0
          %1980 = vmatprep.mubr.bf16.mxu0 0
          %1981 = vmatmul.mubr.bf16.gmra.mxu0 %v1883
          %v1982 = vpop.f32.mrf.mxu0
          %v1983 = vadd.f32 %v1843, %v1982
          %v1984 = vpop.f32.mrf.mxu0
          %v1985 = vpop.f32.mrf.mxu0
          %v1986 = vadd.f32 %v1843, %v1985
          %v1987 = vpop.f32.mrf.mxu0
          %1988 = vdwg.mxu0
          %v1989 = vld [vmem:[#allocation8 + $0x80] sm:$0xf]
          %v1990 = vld [vmem:[#allocation8 + $0x84] sm:$0xf]
          %v1991 = vld [vmem:[#allocation8 + $0x88] sm:$0xf]
          %v1992 = vld [vmem:[#allocation8 + $0x8c] sm:$0xf]
          %v1993 = vld [vmem:[#allocation8 + $0x90] sm:$0xf]
          %v1994 = vld [vmem:[#allocation8 + $0x94] sm:$0xf]
          %v1995 = vld [vmem:[#allocation8 + $0x98] sm:$0xf]
          %v1996 = vld [vmem:[#allocation8 + $0x9c] sm:$0xf]
          %v1997 = vld [vmem:[#allocation8 + $0xa0] sm:$0xf]
          %v1998 = vld [vmem:[#allocation8 + $0xa4] sm:$0xf]
          %v1999 = vld [vmem:[#allocation8 + $0xa8] sm:$0xf]
          %v2000 = vld [vmem:[#allocation8 + $0xac] sm:$0xf]
          %v2001 = vld [vmem:[#allocation8 + $0xb0] sm:$0xf]
          %v2002 = vld [vmem:[#allocation8 + $0xb4] sm:$0xf]
          %v2003 = vld [vmem:[#allocation8 + $0xb8] sm:$0xf]
          %v2004 = vld [vmem:[#allocation8 + $0xbc] sm:$0xf]
          %v2005 = vpack.c.bf16 %v1930, %v1927
          %v2006 = vpack.c.bf16 %v1938, %v1935
          %v2007 = vpack.c.bf16 %v1946, %v1943
          %v2008 = vpack.c.bf16 %v1954, %v1951
          %v2009 = vpack.c.bf16 %v1962, %v1959
          %v2010 = vpack.c.bf16 %v1970, %v1967
          %v2011 = vpack.c.bf16 %v1978, %v1975
          %v2012 = vpack.c.bf16 %v1986, %v1983
          %v2029 = vunpack.c.l.b16 %v1989
          %v2030 = vunpack.c.l.b16 %v1990
          %v2031 = vunpack.c.l.b16 %v1991
          %v2032 = vunpack.c.l.b16 %v1992
          %v2033 = vunpack.c.l.b16 %v1993
          %v2034 = vunpack.c.l.b16 %v1994
          %v2035 = vunpack.c.l.b16 %v1995
          %v2036 = vunpack.c.l.b16 %v1996
          %v2037 = vunpack.c.l.b16 %v1997
          %v2038 = vunpack.c.l.b16 %v1998
          %v2039 = vunpack.c.l.b16 %v1999
          %v2040 = vunpack.c.l.b16 %v2000
          %v2041 = vunpack.c.l.b16 %v2001
          %v2042 = vunpack.c.l.b16 %v2002
          %v2043 = vunpack.c.l.b16 %v2003
          %v2044 = vunpack.c.l.b16 %v2004
          %v2045 = vpack.c.b16 %v2030, %v2029
          %v2046 = vpack.c.b16 %v2032, %v2031
          %v2047 = vpack.c.b16 %v2034, %v2033
          %v2048 = vpack.c.b16 %v2036, %v2035
          %v2049 = vpack.c.b16 %v2038, %v2037
          %v2050 = vpack.c.b16 %v2040, %v2039
          %v2051 = vpack.c.b16 %v2042, %v2041
          %v2052 = vpack.c.b16 %v2044, %v2043
          %2061 = vmatprep.subr.bf16.mxu0 0
          %2062 = vmatpush1.bf16.msra.mxu0 %v2052
          %2063 = vmatprep.subr.bf16.mxu0 0
          %2064 = vmatpush1.bf16.msra.mxu0 %v2051
          %2065 = vmatprep.subr.bf16.mxu0 0
          %2066 = vmatpush1.bf16.msra.mxu0 %v2050
          %2067 = vmatprep.subr.bf16.mxu0 0
          %2068 = vmatpush1.bf16.msra.mxu0 %v2049
          %2069 = vmatprep.subr.bf16.mxu0 0
          %2070 = vmatpush1.bf16.msra.mxu0 %v2048
          %2071 = vmatprep.subr.bf16.mxu0 0
          %2072 = vmatpush1.bf16.msra.mxu0 %v2047
          %2073 = vmatprep.subr.bf16.mxu0 0
          %2074 = vmatpush1.bf16.msra.mxu0 %v2046
          %2075 = vmatprep.subr.bf16.mxu0 0
          %2076 = vmatpush1.bf16.msra.mxu0 %v2045
          %2077 = vmatprep.subr.bf16.mxu0 0
          %2078 = vmatpush2.bf16.msra.mxu0 0
          %2079 = vmatprep.subr.bf16.mxu0 0
          %2080 = vmatpush2.bf16.msra.mxu0 0
          %2081 = vmatprep.subr.bf16.mxu0 0
          %2082 = vmatpush2.bf16.msra.mxu0 0
          %2083 = vmatprep.subr.bf16.mxu0 0
          %2084 = vmatpush2.bf16.msra.mxu0 0
          %2085 = vmatprep.subr.bf16.mxu0 0
          %2086 = vmatpush2.bf16.msra.mxu0 0
          %2087 = vmatprep.subr.bf16.mxu0 0
          %2088 = vmatpush2.bf16.msra.mxu0 0
          %2089 = vmatprep.subr.bf16.mxu0 0
          %2090 = vmatpush2.bf16.msra.mxu0 0
          %2091 = vmatprep.subr.bf16.mxu0 0
          %2092 = vmatpush2.bf16.msra.mxu0 0
          %2093 = vmatprep.mubr.bf16.mxu0 0
          %2094 = vmatmul.mubr.bf16.gmra.mxu0 %v2005
          %v2095 = vpop.f32.mrf.mxu0
          %v2096 = vadd.f32 0.0, %v2095
          %v2097 = vpop.f32.mrf.mxu0
          %v2098 = vpop.f32.mrf.mxu0
          %v2099 = vadd.f32 0.0, %v2098
          %v2100 = vpop.f32.mrf.mxu0
          %2101 = vmatprep.mubr.bf16.mxu0 0
          %2102 = vmatmul.mubr.bf16.gmra.mxu0 %v2006
          %v2103 = vpop.f32.mrf.mxu0
          %v2104 = vadd.f32 0.0, %v2103
          %v2105 = vpop.f32.mrf.mxu0
          %v2106 = vpop.f32.mrf.mxu0
          %v2107 = vadd.f32 0.0, %v2106
          %v2108 = vpop.f32.mrf.mxu0
          %2109 = vmatprep.mubr.bf16.mxu0 0
          %2110 = vmatmul.mubr.bf16.gmra.mxu0 %v2007
          %v2111 = vpop.f32.mrf.mxu0
          %v2112 = vadd.f32 0.0, %v2111
          %v2113 = vpop.f32.mrf.mxu0
          %v2114 = vpop.f32.mrf.mxu0
          %v2115 = vadd.f32 0.0, %v2114
          %v2116 = vpop.f32.mrf.mxu0
          %2117 = vmatprep.mubr.bf16.mxu0 0
          %2118 = vmatmul.mubr.bf16.gmra.mxu0 %v2008
          %v2119 = vpop.f32.mrf.mxu0
          %v2120 = vadd.f32 0.0, %v2119
          %v2121 = vpop.f32.mrf.mxu0
          %v2122 = vpop.f32.mrf.mxu0
          %v2123 = vadd.f32 0.0, %v2122
          %v2124 = vpop.f32.mrf.mxu0
          %2125 = vmatprep.mubr.bf16.mxu0 0
          %2126 = vmatmul.mubr.bf16.gmra.mxu0 %v2009
          %v2127 = vpop.f32.mrf.mxu0
          %v2128 = vadd.f32 0.0, %v2127
          %v2129 = vpop.f32.mrf.mxu0
          %v2130 = vpop.f32.mrf.mxu0
          %v2131 = vadd.f32 0.0, %v2130
          %v2132 = vpop.f32.mrf.mxu0
          %2133 = vmatprep.mubr.bf16.mxu0 0
          %2134 = vmatmul.mubr.bf16.gmra.mxu0 %v2010
          %v2135 = vpop.f32.mrf.mxu0
          %v2136 = vadd.f32 0.0, %v2135
          %v2137 = vpop.f32.mrf.mxu0
          %v2138 = vpop.f32.mrf.mxu0
          %v2139 = vadd.f32 0.0, %v2138
          %v2140 = vpop.f32.mrf.mxu0
          %2141 = vmatprep.mubr.bf16.mxu0 0
          %2142 = vmatmul.mubr.bf16.gmra.mxu0 %v2011
          %v2143 = vpop.f32.mrf.mxu0
          %v2144 = vadd.f32 0.0, %v2143
          %v2145 = vpop.f32.mrf.mxu0
          %v2146 = vpop.f32.mrf.mxu0
          %v2147 = vadd.f32 0.0, %v2146
          %v2148 = vpop.f32.mrf.mxu0
          %2149 = vmatprep.mubr.bf16.mxu0 0
          %2150 = vmatmul.mubr.bf16.gmra.mxu0 %v2012
          %v2151 = vpop.f32.mrf.mxu0
          %v2152 = vadd.f32 0.0, %v2151
          %v2153 = vpop.f32.mrf.mxu0
          %v2154 = vpop.f32.mrf.mxu0
          %v2155 = vadd.f32 0.0, %v2154
          %v2156 = vpop.f32.mrf.mxu0
          %2157 = vdwg.mxu0
          %v2158 = vpack.c.bf16 %v2099, %v2096
          %v2159 = vpack.c.bf16 %v2107, %v2104
          %v2160 = vpack.c.bf16 %v2115, %v2112
          %v2161 = vpack.c.bf16 %v2123, %v2120
          %v2162 = vpack.c.bf16 %v2131, %v2128
          %v2163 = vpack.c.bf16 %v2139, %v2136
          %v2164 = vpack.c.bf16 %v2147, %v2144
          %v2165 = vpack.c.bf16 %v2155, %v2152
          %v2166 = vlaneseq
          %v2167 = vshrl.u32 %v2166, 7
          %v2168 = vsub.s32 4, %v2167
          %v2169 = vrot.slane %v1088, %v2168
          %2170 = vmatprep.subr.bf16.mxu0 0
          %2171 = vmatpush1.bf16.msra.mxu0 %v2165
          %2172 = vmatprep.subr.bf16.mxu0 0
          %2173 = vmatpush1.bf16.msra.mxu0 %v2164
          %2174 = vmatprep.subr.bf16.mxu0 0
          %2175 = vmatpush1.bf16.msra.mxu0 %v2163
          %2176 = vmatprep.subr.bf16.mxu0 0
          %2177 = vmatpush1.bf16.msra.mxu0 %v2162
          %2178 = vmatprep.subr.bf16.mxu0 0
          %2179 = vmatpush1.bf16.msra.mxu0 %v2161
          %2180 = vmatprep.subr.bf16.mxu0 0
          %2181 = vmatpush1.bf16.msra.mxu0 %v2160
          %2182 = vmatprep.subr.bf16.mxu0 0
          %2183 = vmatpush1.bf16.msra.mxu0 %v2159
          %2184 = vmatprep.subr.bf16.mxu0 0
          %2185 = vmatpush1.bf16.msra.mxu0 %v2158
          %2186 = vmatprep.subr.bf16.mxu0 0
          %2187 = vmatpush2.bf16.msra.mxu0 0
          %2188 = vmatprep.subr.bf16.mxu0 0
          %2189 = vmatpush2.bf16.msra.mxu0 0
          %2190 = vmatprep.subr.bf16.mxu0 0
          %2191 = vmatpush2.bf16.msra.mxu0 0
          %2192 = vmatprep.subr.bf16.mxu0 0
          %2193 = vmatpush2.bf16.msra.mxu0 0
          %2194 = vmatprep.subr.bf16.mxu0 0
          %2195 = vmatpush2.bf16.msra.mxu0 0
          %2196 = vmatprep.subr.bf16.mxu0 0
          %2197 = vmatpush2.bf16.msra.mxu0 0
          %2198 = vmatprep.subr.bf16.mxu0 0
          %2199 = vmatpush2.bf16.msra.mxu0 0
          %2200 = vmatprep.subr.bf16.mxu0 0
          %2201 = vmatpush2.bf16.msra.mxu0 0
          %2202 = vmatprep.mubr.bf16.mxu0 0
          %2203 = vmatmul.mubr.bf16.gmra.mxu0 %v1876
          %v2204 = vpop.f32.mrf.mxu0
          %v2205 = vadd.f32 %v2169, %v2204
          %v2206 = vpop.f32.mrf.mxu0
          %v2207 = vpop.f32.mrf.mxu0
          %v2208 = vadd.f32 %v2169, %v2207
          %v2209 = vpop.f32.mrf.mxu0
          %2210 = vmatprep.mubr.bf16.mxu0 0
          %2211 = vmatmul.mubr.bf16.gmra.mxu0 %v1877
          %v2212 = vpop.f32.mrf.mxu0
          %v2213 = vadd.f32 %v2169, %v2212
          %v2214 = vpop.f32.mrf.mxu0
          %v2215 = vpop.f32.mrf.mxu0
          %v2216 = vadd.f32 %v2169, %v2215
          %v2217 = vpop.f32.mrf.mxu0
          %2218 = vmatprep.mubr.bf16.mxu0 0
          %2219 = vmatmul.mubr.bf16.gmra.mxu0 %v1878
          %v2220 = vpop.f32.mrf.mxu0
          %v2221 = vadd.f32 %v2169, %v2220
          %v2222 = vpop.f32.mrf.mxu0
          %v2223 = vpop.f32.mrf.mxu0
          %v2224 = vadd.f32 %v2169, %v2223
          %v2225 = vpop.f32.mrf.mxu0
          %2226 = vmatprep.mubr.bf16.mxu0 0
          %2227 = vmatmul.mubr.bf16.gmra.mxu0 %v1879
          %v2228 = vpop.f32.mrf.mxu0
          %v2229 = vadd.f32 %v2169, %v2228
          %v2230 = vpop.f32.mrf.mxu0
          %v2231 = vpop.f32.mrf.mxu0
          %v2232 = vadd.f32 %v2169, %v2231
          %v2233 = vpop.f32.mrf.mxu0
          %2234 = vmatprep.mubr.bf16.mxu0 0
          %2235 = vmatmul.mubr.bf16.gmra.mxu0 %v1880
          %v2236 = vpop.f32.mrf.mxu0
          %v2237 = vadd.f32 %v2169, %v2236
          %v2238 = vpop.f32.mrf.mxu0
          %v2239 = vpop.f32.mrf.mxu0
          %v2240 = vadd.f32 %v2169, %v2239
          %v2241 = vpop.f32.mrf.mxu0
          %2242 = vmatprep.mubr.bf16.mxu0 0
          %2243 = vmatmul.mubr.bf16.gmra.mxu0 %v1881
          %v2244 = vpop.f32.mrf.mxu0
          %v2245 = vadd.f32 %v2169, %v2244
          %v2246 = vpop.f32.mrf.mxu0
          %v2247 = vpop.f32.mrf.mxu0
          %v2248 = vadd.f32 %v2169, %v2247
          %v2249 = vpop.f32.mrf.mxu0
          %2250 = vmatprep.mubr.bf16.mxu0 0
          %2251 = vmatmul.mubr.bf16.gmra.mxu0 %v1882
          %v2252 = vpop.f32.mrf.mxu0
          %v2253 = vadd.f32 %v2169, %v2252
          %v2254 = vpop.f32.mrf.mxu0
          %v2255 = vpop.f32.mrf.mxu0
          %v2256 = vadd.f32 %v2169, %v2255
          %v2257 = vpop.f32.mrf.mxu0
          %2258 = vmatprep.mubr.bf16.mxu0 0
          %2259 = vmatmul.mubr.bf16.gmra.mxu0 %v1883
          %v2260 = vpop.f32.mrf.mxu0
          %v2261 = vadd.f32 %v2169, %v2260
          %v2262 = vpop.f32.mrf.mxu0
          %v2263 = vpop.f32.mrf.mxu0
          %v2264 = vadd.f32 %v2169, %v2263
          %v2265 = vpop.f32.mrf.mxu0
          %2266 = vdwg.mxu0
          %v2267 = vld [vmem:[#allocation8 + $0xc0] sm:$0xf]
          %v2268 = vld [vmem:[#allocation8 + $0xc4] sm:$0xf]
          %v2269 = vld [vmem:[#allocation8 + $0xc8] sm:$0xf]
          %v2270 = vld [vmem:[#allocation8 + $0xcc] sm:$0xf]
          %v2271 = vld [vmem:[#allocation8 + $0xd0] sm:$0xf]
          %v2272 = vld [vmem:[#allocation8 + $0xd4] sm:$0xf]
          %v2273 = vld [vmem:[#allocation8 + $0xd8] sm:$0xf]
          %v2274 = vld [vmem:[#allocation8 + $0xdc] sm:$0xf]
          %v2275 = vld [vmem:[#allocation8 + $0xe0] sm:$0xf]
          %v2276 = vld [vmem:[#allocation8 + $0xe4] sm:$0xf]
          %v2277 = vld [vmem:[#allocation8 + $0xe8] sm:$0xf]
          %v2278 = vld [vmem:[#allocation8 + $0xec] sm:$0xf]
          %v2279 = vld [vmem:[#allocation8 + $0xf0] sm:$0xf]
          %v2280 = vld [vmem:[#allocation8 + $0xf4] sm:$0xf]
          %v2281 = vld [vmem:[#allocation8 + $0xf8] sm:$0xf]
          %v2282 = vld [vmem:[#allocation8 + $0xfc] sm:$0xf]
          %v2283 = vpack.c.bf16 %v2208, %v2205
          %v2284 = vpack.c.bf16 %v2216, %v2213
          %v2285 = vpack.c.bf16 %v2224, %v2221
          %v2286 = vpack.c.bf16 %v2232, %v2229
          %v2287 = vpack.c.bf16 %v2240, %v2237
          %v2288 = vpack.c.bf16 %v2248, %v2245
          %v2289 = vpack.c.bf16 %v2256, %v2253
          %v2290 = vpack.c.bf16 %v2264, %v2261
          %v2291 = vlaneseq
          %v2292 = vshrl.u32 %v2291, 7
          %v2293 = vsub.s32 5, %v2292
          %v2294 = vrot.slane %v1088, %v2293
          %v2311 = vunpack.c.l.b16 %v2267
          %v2312 = vunpack.c.l.b16 %v2268
          %v2313 = vunpack.c.l.b16 %v2269
          %v2314 = vunpack.c.l.b16 %v2270
          %v2315 = vunpack.c.l.b16 %v2271
          %v2316 = vunpack.c.l.b16 %v2272
          %v2317 = vunpack.c.l.b16 %v2273
          %v2318 = vunpack.c.l.b16 %v2274
          %v2319 = vunpack.c.l.b16 %v2275
          %v2320 = vunpack.c.l.b16 %v2276
          %v2321 = vunpack.c.l.b16 %v2277
          %v2322 = vunpack.c.l.b16 %v2278
          %v2323 = vunpack.c.l.b16 %v2279
          %v2324 = vunpack.c.l.b16 %v2280
          %v2325 = vunpack.c.l.b16 %v2281
          %v2326 = vunpack.c.l.b16 %v2282
          %v2327 = vpack.c.b16 %v2312, %v2311
          %v2328 = vpack.c.b16 %v2314, %v2313
          %v2329 = vpack.c.b16 %v2316, %v2315
          %v2330 = vpack.c.b16 %v2318, %v2317
          %v2331 = vpack.c.b16 %v2320, %v2319
          %v2332 = vpack.c.b16 %v2322, %v2321
          %v2333 = vpack.c.b16 %v2324, %v2323
          %v2334 = vpack.c.b16 %v2326, %v2325
          %2343 = vmatprep.subr.bf16.mxu0 0
          %2344 = vmatpush1.bf16.msra.mxu0 %v2334
          %2345 = vmatprep.subr.bf16.mxu0 0
          %2346 = vmatpush1.bf16.msra.mxu0 %v2333
          %2347 = vmatprep.subr.bf16.mxu0 0
          %2348 = vmatpush1.bf16.msra.mxu0 %v2332
          %2349 = vmatprep.subr.bf16.mxu0 0
          %2350 = vmatpush1.bf16.msra.mxu0 %v2331
          %2351 = vmatprep.subr.bf16.mxu0 0
          %2352 = vmatpush1.bf16.msra.mxu0 %v2330
          %2353 = vmatprep.subr.bf16.mxu0 0
          %2354 = vmatpush1.bf16.msra.mxu0 %v2329
          %2355 = vmatprep.subr.bf16.mxu0 0
          %2356 = vmatpush1.bf16.msra.mxu0 %v2328
          %2357 = vmatprep.subr.bf16.mxu0 0
          %2358 = vmatpush1.bf16.msra.mxu0 %v2327
          %2359 = vmatprep.subr.bf16.mxu0 0
          %2360 = vmatpush2.bf16.msra.mxu0 0
          %2361 = vmatprep.subr.bf16.mxu0 0
          %2362 = vmatpush2.bf16.msra.mxu0 0
          %2363 = vmatprep.subr.bf16.mxu0 0
          %2364 = vmatpush2.bf16.msra.mxu0 0
          %2365 = vmatprep.subr.bf16.mxu0 0
          %2366 = vmatpush2.bf16.msra.mxu0 0
          %2367 = vmatprep.subr.bf16.mxu0 0
          %2368 = vmatpush2.bf16.msra.mxu0 0
          %2369 = vmatprep.subr.bf16.mxu0 0
          %2370 = vmatpush2.bf16.msra.mxu0 0
          %2371 = vmatprep.subr.bf16.mxu0 0
          %2372 = vmatpush2.bf16.msra.mxu0 0
          %2373 = vmatprep.subr.bf16.mxu0 0
          %2374 = vmatpush2.bf16.msra.mxu0 0
          %2375 = vmatprep.mubr.bf16.mxu0 0
          %2376 = vmatmul.mubr.bf16.gmra.mxu0 %v2283
          %v2377 = vpop.f32.mrf.mxu0
          %v2378 = vadd.f32 %v2294, %v2377
          %v2379 = vpop.f32.mrf.mxu0
          %v2380 = vpop.f32.mrf.mxu0
          %v2381 = vadd.f32 %v2294, %v2380
          %v2382 = vpop.f32.mrf.mxu0
          %2383 = vmatprep.mubr.bf16.mxu0 0
          %2384 = vmatmul.mubr.bf16.gmra.mxu0 %v2284
          %v2385 = vpop.f32.mrf.mxu0
          %v2386 = vadd.f32 %v2294, %v2385
          %v2387 = vpop.f32.mrf.mxu0
          %v2388 = vpop.f32.mrf.mxu0
          %v2389 = vadd.f32 %v2294, %v2388
          %v2390 = vpop.f32.mrf.mxu0
          %2391 = vmatprep.mubr.bf16.mxu0 0
          %2392 = vmatmul.mubr.bf16.gmra.mxu0 %v2285
          %v2393 = vpop.f32.mrf.mxu0
          %v2394 = vadd.f32 %v2294, %v2393
          %v2395 = vpop.f32.mrf.mxu0
          %v2396 = vpop.f32.mrf.mxu0
          %v2397 = vadd.f32 %v2294, %v2396
          %v2398 = vpop.f32.mrf.mxu0
          %2399 = vmatprep.mubr.bf16.mxu0 0
          %2400 = vmatmul.mubr.bf16.gmra.mxu0 %v2286
          %v2401 = vpop.f32.mrf.mxu0
          %v2402 = vadd.f32 %v2294, %v2401
          %v2403 = vpop.f32.mrf.mxu0
          %v2404 = vpop.f32.mrf.mxu0
          %v2405 = vadd.f32 %v2294, %v2404
          %v2406 = vpop.f32.mrf.mxu0
          %2407 = vmatprep.mubr.bf16.mxu0 0
          %2408 = vmatmul.mubr.bf16.gmra.mxu0 %v2287
          %v2409 = vpop.f32.mrf.mxu0
          %v2410 = vadd.f32 %v2294, %v2409
          %v2411 = vpop.f32.mrf.mxu0
          %v2412 = vpop.f32.mrf.mxu0
          %v2413 = vadd.f32 %v2294, %v2412
          %v2414 = vpop.f32.mrf.mxu0
          %2415 = vmatprep.mubr.bf16.mxu0 0
          %2416 = vmatmul.mubr.bf16.gmra.mxu0 %v2288
          %v2417 = vpop.f32.mrf.mxu0
          %v2418 = vadd.f32 %v2294, %v2417
          %v2419 = vpop.f32.mrf.mxu0
          %v2420 = vpop.f32.mrf.mxu0
          %v2421 = vadd.f32 %v2294, %v2420
          %v2422 = vpop.f32.mrf.mxu0
          %2423 = vmatprep.mubr.bf16.mxu0 0
          %2424 = vmatmul.mubr.bf16.gmra.mxu0 %v2289
          %v2425 = vpop.f32.mrf.mxu0
          %v2426 = vadd.f32 %v2294, %v2425
          %v2427 = vpop.f32.mrf.mxu0
          %v2428 = vpop.f32.mrf.mxu0
          %v2429 = vadd.f32 %v2294, %v2428
          %v2430 = vpop.f32.mrf.mxu0
          %2431 = vmatprep.mubr.bf16.mxu0 0
          %2432 = vmatmul.mubr.bf16.gmra.mxu0 %v2290
          %v2433 = vpop.f32.mrf.mxu0
          %v2434 = vadd.f32 %v2294, %v2433
          %v2435 = vpop.f32.mrf.mxu0
          %v2436 = vpop.f32.mrf.mxu0
          %v2437 = vadd.f32 %v2294, %v2436
          %v2438 = vpop.f32.mrf.mxu0
          %2439 = vdwg.mxu0
          %vm2440 = vcmp.gt.f32.partialorder %v2378, 0.0
          %vm2441 = vcmp.gt.f32.partialorder %v2381, 0.0
          %vm2442 = vcmp.gt.f32.partialorder %v2386, 0.0
          %vm2443 = vcmp.gt.f32.partialorder %v2389, 0.0
          %vm2444 = vcmp.gt.f32.partialorder %v2394, 0.0
          %vm2445 = vcmp.gt.f32.partialorder %v2397, 0.0
          %vm2446 = vcmp.gt.f32.partialorder %v2402, 0.0
          %vm2447 = vcmp.gt.f32.partialorder %v2405, 0.0
          %vm2448 = vcmp.gt.f32.partialorder %v2410, 0.0
          %vm2449 = vcmp.gt.f32.partialorder %v2413, 0.0
          %vm2450 = vcmp.gt.f32.partialorder %v2418, 0.0
          %vm2451 = vcmp.gt.f32.partialorder %v2421, 0.0
          %vm2452 = vcmp.gt.f32.partialorder %v2426, 0.0
          %vm2453 = vcmp.gt.f32.partialorder %v2429, 0.0
          %vm2454 = vcmp.gt.f32.partialorder %v2434, 0.0
          %vm2455 = vcmp.gt.f32.partialorder %v2437, 0.0
          %v2456 = vmul.f32 %v2378, 0.01
          %v2457 = vmul.f32 %v2381, 0.01
          %v2458 = vmul.f32 %v2386, 0.01
          %v2459 = vmul.f32 %v2389, 0.01
          %v2460 = vmul.f32 %v2394, 0.01
          %v2461 = vmul.f32 %v2397, 0.01
          %v2462 = vmul.f32 %v2402, 0.01
          %v2463 = vmul.f32 %v2405, 0.01
          %v2464 = vmul.f32 %v2410, 0.01
          %v2465 = vmul.f32 %v2413, 0.01
          %v2466 = vmul.f32 %v2418, 0.01
          %v2467 = vmul.f32 %v2421, 0.01
          %v2468 = vmul.f32 %v2426, 0.01
          %v2469 = vmul.f32 %v2429, 0.01
          %v2470 = vmul.f32 %v2434, 0.01
          %v2471 = vmul.f32 %v2437, 0.01
          %v2472 = vsel %vm2440, %v2378, %v2456
          %v2473 = vsel %vm2441, %v2381, %v2457
          %v2474 = vsel %vm2442, %v2386, %v2458
          %v2475 = vsel %vm2443, %v2389, %v2459
          %v2476 = vsel %vm2444, %v2394, %v2460
          %v2477 = vsel %vm2445, %v2397, %v2461
          %v2478 = vsel %vm2446, %v2402, %v2462
          %v2479 = vsel %vm2447, %v2405, %v2463
          %v2480 = vsel %vm2448, %v2410, %v2464
          %v2481 = vsel %vm2449, %v2413, %v2465
          %v2482 = vsel %vm2450, %v2418, %v2466
          %v2483 = vsel %vm2451, %v2421, %v2467
          %v2484 = vsel %vm2452, %v2426, %v2468
          %v2485 = vsel %vm2453, %v2429, %v2469
          %v2486 = vsel %vm2454, %v2434, %v2470
          %v2487 = vsel %vm2455, %v2437, %v2471
          %v2488 = vld [vmem:[#allocation8 + $0x100] sm:$0xf]
          %v2489 = vld [vmem:[#allocation8 + $0x104] sm:$0xf]
          %v2490 = vld [vmem:[#allocation8 + $0x108] sm:$0xf]
          %v2491 = vld [vmem:[#allocation8 + $0x10c] sm:$0xf]
          %v2492 = vld [vmem:[#allocation8 + $0x110] sm:$0xf]
          %v2493 = vld [vmem:[#allocation8 + $0x114] sm:$0xf]
          %v2494 = vld [vmem:[#allocation8 + $0x118] sm:$0xf]
          %v2495 = vld [vmem:[#allocation8 + $0x11c] sm:$0xf]
          %v2496 = vld [vmem:[#allocation8 + $0x120] sm:$0xf]
          %v2497 = vld [vmem:[#allocation8 + $0x124] sm:$0xf]
          %v2498 = vld [vmem:[#allocation8 + $0x128] sm:$0xf]
          %v2499 = vld [vmem:[#allocation8 + $0x12c] sm:$0xf]
          %v2500 = vld [vmem:[#allocation8 + $0x130] sm:$0xf]
          %v2501 = vld [vmem:[#allocation8 + $0x134] sm:$0xf]
          %v2502 = vld [vmem:[#allocation8 + $0x138] sm:$0xf]
          %v2503 = vld [vmem:[#allocation8 + $0x13c] sm:$0xf]
          %v2504 = vpack.c.bf16 %v2473, %v2472
          %v2505 = vpack.c.bf16 %v2475, %v2474
          %v2506 = vpack.c.bf16 %v2477, %v2476
          %v2507 = vpack.c.bf16 %v2479, %v2478
          %v2508 = vpack.c.bf16 %v2481, %v2480
          %v2509 = vpack.c.bf16 %v2483, %v2482
          %v2510 = vpack.c.bf16 %v2485, %v2484
          %v2511 = vpack.c.bf16 %v2487, %v2486
          %v2512 = vlaneseq
          %v2513 = vshrl.u32 %v2512, 7
          %v2514 = vsub.s32 6, %v2513
          %v2515 = vrot.slane %v1088, %v2514
          %v2532 = vunpack.c.l.b16 %v2488
          %v2533 = vunpack.c.l.b16 %v2489
          %v2534 = vunpack.c.l.b16 %v2490
          %v2535 = vunpack.c.l.b16 %v2491
          %v2536 = vunpack.c.l.b16 %v2492
          %v2537 = vunpack.c.l.b16 %v2493
          %v2538 = vunpack.c.l.b16 %v2494
          %v2539 = vunpack.c.l.b16 %v2495
          %v2540 = vunpack.c.l.b16 %v2496
          %v2541 = vunpack.c.l.b16 %v2497
          %v2542 = vunpack.c.l.b16 %v2498
          %v2543 = vunpack.c.l.b16 %v2499
          %v2544 = vunpack.c.l.b16 %v2500
          %v2545 = vunpack.c.l.b16 %v2501
          %v2546 = vunpack.c.l.b16 %v2502
          %v2547 = vunpack.c.l.b16 %v2503
          %v2548 = vpack.c.b16 %v2533, %v2532
          %v2549 = vpack.c.b16 %v2535, %v2534
          %v2550 = vpack.c.b16 %v2537, %v2536
          %v2551 = vpack.c.b16 %v2539, %v2538
          %v2552 = vpack.c.b16 %v2541, %v2540
          %v2553 = vpack.c.b16 %v2543, %v2542
          %v2554 = vpack.c.b16 %v2545, %v2544
          %v2555 = vpack.c.b16 %v2547, %v2546
          %2564 = vmatprep.subr.bf16.mxu0 0
          %2565 = vmatpush1.bf16.msra.mxu0 %v2555
          %2566 = vmatprep.subr.bf16.mxu0 0
          %2567 = vmatpush1.bf16.msra.mxu0 %v2554
          %2568 = vmatprep.subr.bf16.mxu0 0
          %2569 = vmatpush1.bf16.msra.mxu0 %v2553
          %2570 = vmatprep.subr.bf16.mxu0 0
          %2571 = vmatpush1.bf16.msra.mxu0 %v2552
          %2572 = vmatprep.subr.bf16.mxu0 0
          %2573 = vmatpush1.bf16.msra.mxu0 %v2551
          %2574 = vmatprep.subr.bf16.mxu0 0
          %2575 = vmatpush1.bf16.msra.mxu0 %v2550
          %2576 = vmatprep.subr.bf16.mxu0 0
          %2577 = vmatpush1.bf16.msra.mxu0 %v2549
          %2578 = vmatprep.subr.bf16.mxu0 0
          %2579 = vmatpush1.bf16.msra.mxu0 %v2548
          %2580 = vmatprep.subr.bf16.mxu0 0
          %2581 = vmatpush2.bf16.msra.mxu0 0
          %2582 = vmatprep.subr.bf16.mxu0 0
          %2583 = vmatpush2.bf16.msra.mxu0 0
          %2584 = vmatprep.subr.bf16.mxu0 0
          %2585 = vmatpush2.bf16.msra.mxu0 0
          %2586 = vmatprep.subr.bf16.mxu0 0
          %2587 = vmatpush2.bf16.msra.mxu0 0
          %2588 = vmatprep.subr.bf16.mxu0 0
          %2589 = vmatpush2.bf16.msra.mxu0 0
          %2590 = vmatprep.subr.bf16.mxu0 0
          %2591 = vmatpush2.bf16.msra.mxu0 0
          %2592 = vmatprep.subr.bf16.mxu0 0
          %2593 = vmatpush2.bf16.msra.mxu0 0
          %2594 = vmatprep.subr.bf16.mxu0 0
          %2595 = vmatpush2.bf16.msra.mxu0 0
          %2596 = vmatprep.mubr.bf16.mxu0 0
          %2597 = vmatmul.mubr.bf16.gmra.mxu0 %v2504
          %v2598 = vpop.f32.mrf.mxu0
          %v2599 = vadd.f32 %v2515, %v2598
          %v2600 = vpop.f32.mrf.mxu0
          %v2601 = vpop.f32.mrf.mxu0
          %v2602 = vadd.f32 %v2515, %v2601
          %v2603 = vpop.f32.mrf.mxu0
          %2604 = vmatprep.mubr.bf16.mxu0 0
          %2605 = vmatmul.mubr.bf16.gmra.mxu0 %v2505
          %v2606 = vpop.f32.mrf.mxu0
          %v2607 = vadd.f32 %v2515, %v2606
          %v2608 = vpop.f32.mrf.mxu0
          %v2609 = vpop.f32.mrf.mxu0
          %v2610 = vadd.f32 %v2515, %v2609
          %v2611 = vpop.f32.mrf.mxu0
          %2612 = vmatprep.mubr.bf16.mxu0 0
          %2613 = vmatmul.mubr.bf16.gmra.mxu0 %v2506
          %v2614 = vpop.f32.mrf.mxu0
          %v2615 = vadd.f32 %v2515, %v2614
          %v2616 = vpop.f32.mrf.mxu0
          %v2617 = vpop.f32.mrf.mxu0
          %v2618 = vadd.f32 %v2515, %v2617
          %v2619 = vpop.f32.mrf.mxu0
          %2620 = vmatprep.mubr.bf16.mxu0 0
          %2621 = vmatmul.mubr.bf16.gmra.mxu0 %v2507
          %v2622 = vpop.f32.mrf.mxu0
          %v2623 = vadd.f32 %v2515, %v2622
          %v2624 = vpop.f32.mrf.mxu0
          %v2625 = vpop.f32.mrf.mxu0
          %v2626 = vadd.f32 %v2515, %v2625
          %v2627 = vpop.f32.mrf.mxu0
          %2628 = vmatprep.mubr.bf16.mxu0 0
          %2629 = vmatmul.mubr.bf16.gmra.mxu0 %v2508
          %v2630 = vpop.f32.mrf.mxu0
          %v2631 = vadd.f32 %v2515, %v2630
          %v2632 = vpop.f32.mrf.mxu0
          %v2633 = vpop.f32.mrf.mxu0
          %v2634 = vadd.f32 %v2515, %v2633
          %v2635 = vpop.f32.mrf.mxu0
          %2636 = vmatprep.mubr.bf16.mxu0 0
          %2637 = vmatmul.mubr.bf16.gmra.mxu0 %v2509
          %v2638 = vpop.f32.mrf.mxu0
          %v2639 = vadd.f32 %v2515, %v2638
          %v2640 = vpop.f32.mrf.mxu0
          %v2641 = vpop.f32.mrf.mxu0
          %v2642 = vadd.f32 %v2515, %v2641
          %v2643 = vpop.f32.mrf.mxu0
          %2644 = vmatprep.mubr.bf16.mxu0 0
          %2645 = vmatmul.mubr.bf16.gmra.mxu0 %v2510
          %v2646 = vpop.f32.mrf.mxu0
          %v2647 = vadd.f32 %v2515, %v2646
          %v2648 = vpop.f32.mrf.mxu0
          %v2649 = vpop.f32.mrf.mxu0
          %v2650 = vadd.f32 %v2515, %v2649
          %v2651 = vpop.f32.mrf.mxu0
          %2652 = vmatprep.mubr.bf16.mxu0 0
          %2653 = vmatmul.mubr.bf16.gmra.mxu0 %v2511
          %v2654 = vpop.f32.mrf.mxu0
          %v2655 = vadd.f32 %v2515, %v2654
          %v2656 = vpop.f32.mrf.mxu0
          %v2657 = vpop.f32.mrf.mxu0
          %v2658 = vadd.f32 %v2515, %v2657
          %v2659 = vpop.f32.mrf.mxu0
          %2660 = vdwg.mxu0
          %2661 = vst [vmem:[%s9] sm:$0xff] %v2599
          %2662 = vst [vmem:[%s9 + $0x8] sm:$0xff] %v2602
          %2663 = vst [vmem:[%s9 + $0x10] sm:$0xff] %v2607
          %2664 = vst [vmem:[%s9 + $0x18] sm:$0xff] %v2610
          %2665 = vst [vmem:[%s9 + $0x20] sm:$0xff] %v2615
          %2666 = vst [vmem:[%s9 + $0x28] sm:$0xff] %v2618
          %2667 = vst [vmem:[%s9 + $0x30] sm:$0xff] %v2623
          %2668 = vst [vmem:[%s9 + $0x38] sm:$0xff] %v2626
          %2669 = vst [vmem:[%s9 + $0x40] sm:$0xff] %v2631
          %2670 = vst [vmem:[%s9 + $0x48] sm:$0xff] %v2634
          %2671 = vst [vmem:[%s9 + $0x50] sm:$0xff] %v2639
          %2672 = vst [vmem:[%s9 + $0x58] sm:$0xff] %v2642
          %2673 = vst [vmem:[%s9 + $0x60] sm:$0xff] %v2647
          %2674 = vst [vmem:[%s9 + $0x68] sm:$0xff] %v2650
          %2675 = vst [vmem:[%s9 + $0x70] sm:$0xff] %v2655
          %2676 = vst [vmem:[%s9 + $0x78] sm:$0xff] %v2658
        $region84: #{dgcn_apply.1} parent=55 // pred_fallthru
          _
        // Predicated region
        $region85: #{dgcn_apply.1} parent=55 // pred_check
          %p2677 = pneg %p249
        $region86: #{dgcn_apply.1} parent=55 // pred_check_branch
          %2679 = sbr.rel (%p2677) target = $region88
        $region87: #{dgcn_apply.1} parent=55 // pred_region
          _
        $region88: #{dgcn_apply.1} parent=55 // pred_fallthru
          _
        // Predicated region
        $region89: #{dgcn_apply.1} parent=55 // pred_check
          %p2680 = pneg %p249
        $region90: #{dgcn_apply.1} parent=55 // pred_check_branch
          %2682 = sbr.rel (%p2680) target = $region92
        $region91: #{dgcn_apply.1} parent=55 // pred_region
          _
        $region92: #{dgcn_apply.1} parent=55 // pred_fallthru
          _
      $region56: #{dgcn_apply.1} parent=5 // pred_fallthru
        _
      %p2683 = scmp.le.s32.totalorder 2, %s22
      // Predicated region
      $region93: #{dgcn_apply.1} parent=5 // pred_check
        %p2684 = pneg %p2683
      $region94: #{dgcn_apply.1} parent=5 // pred_check_branch
        %2686 = sbr.rel (%p2684) target = $region96
      $region95: #{dgcn_apply.1} parent=5 // pred_region
        %s2687 = ssub.s32 %s22, 2
      $region96: #{dgcn_apply.1} parent=5 // pred_fallthru
        _
    $region6: #{dgcn_apply.1} parent=1 // loop_footer
      %s26 = sadd.s32 1, %s22
    $region7: #{dgcn_apply.1} parent=1 // loop_footer_branch
      %21 = sbr.rel target = $region3
    $region8: #{dgcn_apply.1} parent=1 // loop_exit
      _
    %2688 = vsyncpa [#allocation4], 1
    %s2689 = scalar_lea.sflag [#allocation4], 1
    %2690 = vsyncpa %s2689, 1
    %2691 = vsyncpa [#allocation6], 1
    %s2692 = scalar_lea.sflag [#allocation6], 1
    %2693 = vsyncpa %s2692, 1
    %2694 = vsyncpa [#allocation9], 1

</llo_original>
